<compile_context>
chip_gen: v5e
topology: v5e:2x2
jax: 0.10.0
libtpu: 0.0.40
codegen_flags: <defaults>
</compile_context>

<pallas_src>
import jax
import jax.numpy as jnp
from jax.experimental import pallas as pl
from jax.experimental.pallas import tpu as pltpu

NEG_SLOPE = 0.01  # PyTorch nn.LeakyReLU default


def _leaky_relu(x):
    # Equivalent to LeakyReLU for 0 < slope < 1; one VPU max instead of cmp+select.
    return jnp.maximum(x, NEG_SLOPE * x)


def _edge_mlp_bn_kernel(src_ref, dst_ref, e_ref,          # (TE,1) i32 x2, (TE, bond_dim)
                        ap_ref,                            # (2*Np, D) = [atom@W1s ; atom@W1d]
                        w1e_ref, b1_ref,                   # (bond_dim, D), (1, D)
                        w2_ref, b2_ref,                    # (D, D), (1, D)
                        w3_ref, b3_ref,                    # (D, D), (1, D)
                        scale_ref, shift_ref,              # (1, D) folded eval BatchNorm
                        out_ref):                          # (TE, D)
    te = src_ref.shape[0]
    two_n = ap_ref.shape[0]
    n_pad = two_n // 2

    # In-kernel edge-endpoint gather fused with the layer-1 node projection:
    # build a two-hot selection matrix and push it through the MXU against the
    # pre-projected node features. Node data never leaves VMEM.
    col = jax.lax.broadcasted_iota(jnp.int32, (te, two_n), 1)
    hit = (col == src_ref[...]) | (col == (dst_ref[...] + n_pad))
    twohot = hit.astype(jnp.float32).astype(ap_ref.dtype)

    # --- Linear1 on the (virtual) concat [h_src, h_dst, e], never materialized.
    x = (jnp.dot(twohot, ap_ref[...], preferred_element_type=jnp.float32)
         + jnp.dot(e_ref[...], w1e_ref[...], preferred_element_type=jnp.float32)
         + b1_ref[...])
    x = _leaky_relu(x)

    # --- Linear2 + LeakyReLU
    x = _leaky_relu(jnp.dot(x.astype(w2_ref.dtype), w2_ref[...],
                            preferred_element_type=jnp.float32) + b2_ref[...])

    # --- Linear3 + LeakyReLU
    x = _leaky_relu(jnp.dot(x.astype(w3_ref.dtype), w3_ref[...],
                            preferred_element_type=jnp.float32) + b3_ref[...])

    # --- Dropout: identity (eval). BatchNorm1d (eval): y * scale + shift.
    out_ref[...] = (x * scale_ref[...] + shift_ref[...]).astype(out_ref.dtype)


def dti_conv_graph3_layer(atom_feats, bond_feats, src, dst, params, *,
                          block_edges=512,
                          compute_dtype=jnp.bfloat16,
                          out_dtype=jnp.float32):
    """Forward pass of DTIConvGraph3Layer_Shenyu (eval mode)."""
    N, node_dim = atom_feats.shape
    E, bond_dim = bond_feats.shape
    w1 = params['w1']                                # (2*node_dim + bond_dim, out_dim)
    D = w1.shape[1]
    assert w1.shape[0] == 2 * node_dim + bond_dim

    f32 = jnp.float32

    # Fold eval-mode BatchNorm1d into per-feature scale/shift (applied after LReLU -> exact).
    scale = (params['bn_gamma'] / jnp.sqrt(params['bn_var'] + params['bn_eps'])).astype(f32)
    shift = (params['bn_beta'] - params['bn_mean'] * scale).astype(f32)

    # Lane-dense output guardrail: pad the feature dim to a multiple of 128.
    d_pad = pl.cdiv(D, 128) * 128
    dpad = d_pad - D

    def pad_cols(a):   # (r, D) -> (r, d_pad)
        return jnp.pad(a, ((0, 0), (0, dpad))) if dpad else a

    def pad_square(a):  # (D, D) -> (d_pad, d_pad)
        return jnp.pad(a, ((0, dpad), (0, dpad))) if dpad else a

    def pad_vec(a):     # (D,) -> (1, d_pad) f32
        a = a.reshape(1, D).astype(f32)
        return jnp.pad(a, ((0, 0), (0, dpad))) if dpad else a

    # Split W1 row-wise and pre-project all node features (tiny N x D matmuls) so the
    # in-kernel gather happens on already-projected rows via one two-hot MXU matmul.
    w1s, w1d, w1e = w1[:node_dim], w1[node_dim:2 * node_dim], w1[2 * node_dim:]
    n_pad = pl.cdiv(N, 64) * 64                      # 2*n_pad is a multiple of 128
    atom_p = jnp.pad(atom_feats.astype(f32), ((0, n_pad - N), (0, 0)))
    hi = jax.lax.Precision.HIGHEST
    atom_proj = jnp.concatenate(
        [jnp.dot(atom_p, w1s.astype(f32), precision=hi),
         jnp.dot(atom_p, w1d.astype(f32), precision=hi)], axis=0)   # (2*n_pad, D)

    atom_proj = pad_cols(atom_proj).astype(compute_dtype)
    w1e = pad_cols(w1e).astype(compute_dtype)
    w2 = pad_square(params['w2']).astype(compute_dtype)
    w3 = pad_square(params['w3']).astype(compute_dtype)
    b1 = pad_vec(params['b1'])
    b2 = pad_vec(params['b2'])
    b3 = pad_vec(params['b3'])
    scale = pad_vec(scale)
    shift = pad_vec(shift)

    # Edge-row tiling: big tiles (amortize per-step + weight-reload cost), but keep the
    # grid at >= 2 steps so both v7x TensorCores get work on the "parallel" axis.
    half = (E + 1) // 2
    te = min(block_edges, max(8, half))
    te = pl.cdiv(te, 8) * 8
    e_pad = pl.cdiv(E, te) * te
    pad_e = e_pad - E

    e_in = bond_feats.astype(compute_dtype)
    src2 = src.astype(jnp.int32).reshape(E, 1)
    dst2 = dst.astype(jnp.int32).reshape(E, 1)
    if pad_e:
        e_in = jnp.pad(e_in, ((0, pad_e), (0, 0)))
        src2 = jnp.pad(src2, ((0, pad_e), (0, 0)))
        dst2 = jnp.pad(dst2, ((0, pad_e), (0, 0)))

    grid = (e_pad // te,)

    def row_spec(d):
        return pl.BlockSpec((te, d), lambda i: (i, 0))

    def full_spec(a):
        return pl.BlockSpec(a.shape, lambda i, nd=a.ndim: (0,) * nd)

    weights = [atom_proj, w1e, b1, w2, b2, w3, b3, scale, shift]
    in_specs = [row_spec(1), row_spec(1), row_spec(bond_dim)] + [full_spec(w) for w in weights]

    cd_bytes = jnp.dtype(compute_dtype).itemsize
    out_bytes = jnp.dtype(out_dtype).itemsize
    flops = 2 * e_pad * (2 * n_pad * d_pad + bond_dim * d_pad + 2 * d_pad * d_pad)
    bytes_accessed = (e_pad * (bond_dim * cd_bytes + 2 * 4 + d_pad * out_bytes)
                      + sum(int(w.size) * int(w.dtype.itemsize) for w in weights))

    out = pl.pallas_call(
        _edge_mlp_bn_kernel,
        out_shape=jax.ShapeDtypeStruct((e_pad, d_pad), out_dtype),
        grid_spec=pltpu.PrefetchScalarGridSpec(
            num_scalar_prefetch=0,
            grid=grid,
            in_specs=in_specs,
            out_specs=pl.BlockSpec((te, d_pad), lambda i: (i, 0))),
        compiler_params=pltpu.CompilerParams(
            dimension_semantics=("parallel",)),
        cost_estimate=pl.CostEstimate(flops=flops, transcendentals=0,
                                      bytes_accessed=bytes_accessed),
    )(src2, dst2, e_in, *weights)

    return out[:E, :D]


def reference(atom_feats, bond_feats, src, dst, params):
    """Pure-JAX reference matching the PyTorch forward (eval mode)."""
    lrelu = lambda x: jnp.where(x >= 0, x, NEG_SLOPE * x)
    x = jnp.concatenate([atom_feats[src], atom_feats[dst], bond_feats], axis=1)
    y = lrelu(x @ params['w1'] + params['b1'])
    y = lrelu(y @ params['w2'] + params['b2'])
    y = lrelu(y @ params['w3'] + params['b3'])
    inv_std = 1.0 / jnp.sqrt(params['bn_var'] + params['bn_eps'])
    return (y - params['bn_mean']) * inv_std * params['bn_gamma'] + params['bn_beta']


if __name__ == "__main__":
    # Small demo shapes: 48 nodes, 256 edges, node/bond dim 64 -> in_dim 192, out_dim 128.
    N, E = 48, 256
    NODE_DIM, BOND_DIM, OUT_DIM = 64, 64, 128
    IN_DIM = 2 * NODE_DIM + BOND_DIM

    key = jax.random.PRNGKey(0)
    keys = jax.random.split(key, 12)
    s = 0.1
    params = {
        'w1': jax.random.normal(keys[0], (IN_DIM, OUT_DIM), jnp.float32) * s,
        'b1': jax.random.normal(keys[1], (OUT_DIM,), jnp.float32) * s,
        'w2': jax.random.normal(keys[2], (OUT_DIM, OUT_DIM), jnp.float32) * s,
        'b2': jax.random.normal(keys[3], (OUT_DIM,), jnp.float32) * s,
        'w3': jax.random.normal(keys[4], (OUT_DIM, OUT_DIM), jnp.float32) * s,
        'b3': jax.random.normal(keys[5], (OUT_DIM,), jnp.float32) * s,
        'bn_gamma': jnp.abs(jax.random.normal(keys[6], (OUT_DIM,), jnp.float32)) + 0.5,
        'bn_beta': jax.random.normal(keys[7], (OUT_DIM,), jnp.float32) * s,
        'bn_mean': jax.random.normal(keys[8], (OUT_DIM,), jnp.float32) * s,
        'bn_var': jnp.abs(jax.random.normal(keys[9], (OUT_DIM,), jnp.float32)) + 0.5,
        'bn_eps': jnp.float32(1e-5),
    }
    atom_feats = jax.random.normal(keys[10], (N, NODE_DIM), jnp.float32)
    bond_feats = jax.random.normal(keys[11], (E, BOND_DIM), jnp.float32)
    idx_key_s, idx_key_d = jax.random.split(jax.random.PRNGKey(1))
    src = jax.random.randint(idx_key_s, (E,), 0, N, dtype=jnp.int32)
    dst = jax.random.randint(idx_key_d, (E,), 0, N, dtype=jnp.int32)

    ref = reference(atom_feats, bond_feats, src, dst, params)

    # Exact-precision path (f32 operands in the kernel) for tight verification.
    out_f32 = dti_conv_graph3_layer(atom_feats, bond_feats, src, dst, params,
                                    block_edges=512, compute_dtype=jnp.float32)
    jax.block_until_ready(out_f32)
    assert out_f32.shape == (E, OUT_DIM)
    assert jnp.allclose(out_f32, ref, rtol=1e-4, atol=1e-4), \
        f"f32 max abs err {jnp.max(jnp.abs(out_f32 - ref))}"

    # bf16 MXU operands with f32 accumulation: the production-speed configuration.
    out_bf16 = dti_conv_graph3_layer(atom_feats, bond_feats, src, dst, params,
                                     block_edges=512, compute_dtype=jnp.bfloat16)
    jax.block_until_ready(out_bf16)
    assert out_bf16.shape == (E, OUT_DIM)
    assert jnp.allclose(out_bf16, ref, rtol=5e-2, atol=5e-2), \
        f"bf16 max abs err {jnp.max(jnp.abs(out_bf16 - ref))}"

    print("KERNEL_OK")
</pallas_src>

<mosaic_0001>
module attributes {stable_mosaic.version = 11 : i64} {
  func.func @_edge_mlp_bn_kernel(%arg0: i32, %arg1: memref<128x1xi32, #tpu.memory_space<vmem>>, %arg2: memref<128x1xi32, #tpu.memory_space<vmem>>, %arg3: memref<128x64xf32, #tpu.memory_space<vmem>>, %arg4: memref<128x128xf32, #tpu.memory_space<vmem>>, %arg5: memref<64x128xf32, #tpu.memory_space<vmem>>, %arg6: memref<1x128xf32, #tpu.memory_space<vmem>>, %arg7: memref<128x128xf32, #tpu.memory_space<vmem>>, %arg8: memref<1x128xf32, #tpu.memory_space<vmem>>, %arg9: memref<128x128xf32, #tpu.memory_space<vmem>>, %arg10: memref<1x128xf32, #tpu.memory_space<vmem>>, %arg11: memref<1x128xf32, #tpu.memory_space<vmem>>, %arg12: memref<1x128xf32, #tpu.memory_space<vmem>>, %arg13: memref<128x128xf32, #tpu.memory_space<vmem>>) attributes {dimension_semantics = [#tpu.dimension_semantics<parallel>], iteration_bounds = array<i64: 2>, scalar_prefetch = 0 : i64, scratch_operands = 0 : i64, tpu.core_type = #tpu.core_type<tc>, window_params = [{transform_indices = @transform_0, window_bounds = array<i64: 128, 1>}, {transform_indices = @transform_1, window_bounds = array<i64: 128, 1>}, {transform_indices = @transform_2, window_bounds = array<i64: 128, 64>}, {pipeline_mode = #tpu.pipeline_mode<synchronous>, transform_indices = @transform_3, window_bounds = array<i64: 128, 128>}, {pipeline_mode = #tpu.pipeline_mode<synchronous>, transform_indices = @transform_4, window_bounds = array<i64: 64, 128>}, {pipeline_mode = #tpu.pipeline_mode<synchronous>, transform_indices = @transform_5, window_bounds = array<i64: 1, 128>}, {pipeline_mode = #tpu.pipeline_mode<synchronous>, transform_indices = @transform_6, window_bounds = array<i64: 128, 128>}, {pipeline_mode = #tpu.pipeline_mode<synchronous>, transform_indices = @transform_7, window_bounds = array<i64: 1, 128>}, {pipeline_mode = #tpu.pipeline_mode<synchronous>, transform_indices = @transform_8, window_bounds = array<i64: 128, 128>}, {pipeline_mode = #tpu.pipeline_mode<synchronous>, transform_indices = @transform_9, window_bounds = array<i64: 1, 128>}, {pipeline_mode = #tpu.pipeline_mode<synchronous>, transform_indices = @transform_10, window_bounds = array<i64: 1, 128>}, {pipeline_mode = #tpu.pipeline_mode<synchronous>, transform_indices = @transform_11, window_bounds = array<i64: 1, 128>}, {transform_indices = @transform_12, window_bounds = array<i64: 128, 128>}]} {
    %0 = tpu.iota {dimensions = array<i32: 1>} : vector<128x128xi32>
    %c0 = arith.constant 0 : index
    %c0_0 = arith.constant 0 : index
    %1 = vector.load %arg1[%c0, %c0_0] : memref<128x1xi32, #tpu.memory_space<vmem>>, vector<128x1xi32>
    %2 = vector.broadcast %1 : vector<128x1xi32> to vector<128x128xi32>
    %3 = arith.cmpi eq, %0, %2 : vector<128x128xi32>
    %c0_1 = arith.constant 0 : index
    %c0_2 = arith.constant 0 : index
    %4 = vector.load %arg2[%c0_1, %c0_2] : memref<128x1xi32, #tpu.memory_space<vmem>>, vector<128x1xi32>
    %c64_i32 = arith.constant 64 : i32
    %5 = vector.broadcast %c64_i32 : i32 to vector<128x1xi32>
    %6 = arith.addi %4, %5 : vector<128x1xi32>
    %7 = vector.broadcast %6 : vector<128x1xi32> to vector<128x128xi32>
    %8 = arith.cmpi eq, %0, %7 : vector<128x128xi32>
    %9 = arith.ori %3, %8 : vector<128x128xi1>
    %10 = arith.extui %9 : vector<128x128xi1> to vector<128x128xi32>
    %11 = arith.sitofp %10 : vector<128x128xi32> to vector<128x128xf32>
    %c0_3 = arith.constant 0 : index
    %c0_4 = arith.constant 0 : index
    %12 = vector.load %arg4[%c0_3, %c0_4] : memref<128x128xf32, #tpu.memory_space<vmem>>, vector<128x128xf32>
    %cst = arith.constant dense<0.000000e+00> : vector<128x128xf32>
    %13 = tpu.matmul %11, %12, %cst {dimension_numbers = #tpu.dot_dimension_numbers<[1], [0], [0], [1], [0, 0, 1, 1], [], []>} : vector<128x128xf32>, vector<128x128xf32>, vector<128x128xf32> -> vector<128x128xf32>
    %c0_5 = arith.constant 0 : index
    %c0_6 = arith.constant 0 : index
    %14 = vector.load %arg3[%c0_5, %c0_6] : memref<128x64xf32, #tpu.memory_space<vmem>>, vector<128x64xf32>
    %c0_7 = arith.constant 0 : index
    %c0_8 = arith.constant 0 : index
    %15 = vector.load %arg5[%c0_7, %c0_8] : memref<64x128xf32, #tpu.memory_space<vmem>>, vector<64x128xf32>
    %cst_9 = arith.constant dense<0.000000e+00> : vector<128x128xf32>
    %16 = tpu.matmul %14, %15, %cst_9 {dimension_numbers = #tpu.dot_dimension_numbers<[1], [0], [0], [1], [0, 0, 1, 1], [], []>} : vector<128x64xf32>, vector<64x128xf32>, vector<128x128xf32> -> vector<128x128xf32>
    %17 = arith.addf %13, %16 : vector<128x128xf32>
    %c0_10 = arith.constant 0 : index
    %c0_11 = arith.constant 0 : index
    %18 = vector.load %arg6[%c0_10, %c0_11] : memref<1x128xf32, #tpu.memory_space<vmem>>, vector<1x128xf32>
    %19 = vector.broadcast %18 : vector<1x128xf32> to vector<128x128xf32>
    %20 = arith.addf %17, %19 : vector<128x128xf32>
    %cst_12 = arith.constant 0.00999999977 : f32
    %21 = vector.broadcast %cst_12 : f32 to vector<128x128xf32>
    %22 = arith.mulf %21, %20 : vector<128x128xf32>
    %23 = arith.maximumf %20, %22 : vector<128x128xf32>
    %c0_13 = arith.constant 0 : index
    %c0_14 = arith.constant 0 : index
    %24 = vector.load %arg7[%c0_13, %c0_14] : memref<128x128xf32, #tpu.memory_space<vmem>>, vector<128x128xf32>
    %cst_15 = arith.constant dense<0.000000e+00> : vector<128x128xf32>
    %25 = tpu.matmul %23, %24, %cst_15 {dimension_numbers = #tpu.dot_dimension_numbers<[1], [0], [0], [1], [0, 0, 1, 1], [], []>} : vector<128x128xf32>, vector<128x128xf32>, vector<128x128xf32> -> vector<128x128xf32>
    %c0_16 = arith.constant 0 : index
    %c0_17 = arith.constant 0 : index
    %26 = vector.load %arg8[%c0_16, %c0_17] : memref<1x128xf32, #tpu.memory_space<vmem>>, vector<1x128xf32>
    %27 = vector.broadcast %26 : vector<1x128xf32> to vector<128x128xf32>
    %28 = arith.addf %25, %27 : vector<128x128xf32>
    %cst_18 = arith.constant 0.00999999977 : f32
    %29 = vector.broadcast %cst_18 : f32 to vector<128x128xf32>
    %30 = arith.mulf %29, %28 : vector<128x128xf32>
    %31 = arith.maximumf %28, %30 : vector<128x128xf32>
    %c0_19 = arith.constant 0 : index
    %c0_20 = arith.constant 0 : index
    %32 = vector.load %arg9[%c0_19, %c0_20] : memref<128x128xf32, #tpu.memory_space<vmem>>, vector<128x128xf32>
    %cst_21 = arith.constant dense<0.000000e+00> : vector<128x128xf32>
    %33 = tpu.matmul %31, %32, %cst_21 {dimension_numbers = #tpu.dot_dimension_numbers<[1], [0], [0], [1], [0, 0, 1, 1], [], []>} : vector<128x128xf32>, vector<128x128xf32>, vector<128x128xf32> -> vector<128x128xf32>
    %c0_22 = arith.constant 0 : index
    %c0_23 = arith.constant 0 : index
    %34 = vector.load %arg10[%c0_22, %c0_23] : memref<1x128xf32, #tpu.memory_space<vmem>>, vector<1x128xf32>
    %35 = vector.broadcast %34 : vector<1x128xf32> to vector<128x128xf32>
    %36 = arith.addf %33, %35 : vector<128x128xf32>
    %cst_24 = arith.constant 0.00999999977 : f32
    %37 = vector.broadcast %cst_24 : f32 to vector<128x128xf32>
    %38 = arith.mulf %37, %36 : vector<128x128xf32>
    %39 = arith.maximumf %36, %38 : vector<128x128xf32>
    %c0_25 = arith.constant 0 : index
    %c0_26 = arith.constant 0 : index
    %40 = vector.load %arg11[%c0_25, %c0_26] : memref<1x128xf32, #tpu.memory_space<vmem>>, vector<1x128xf32>
    %41 = vector.broadcast %40 : vector<1x128xf32> to vector<128x128xf32>
    %42 = arith.mulf %39, %41 : vector<128x128xf32>
    %c0_27 = arith.constant 0 : index
    %c0_28 = arith.constant 0 : index
    %43 = vector.load %arg12[%c0_27, %c0_28] : memref<1x128xf32, #tpu.memory_space<vmem>>, vector<1x128xf32>
    %44 = vector.broadcast %43 : vector<1x128xf32> to vector<128x128xf32>
    %45 = arith.addf %42, %44 : vector<128x128xf32>
    %c0_29 = arith.constant 0 : index
    %c0_30 = arith.constant 0 : index
    %46 = vector.load %arg13[%c0_29, %c0_30] : memref<128x128xf32, #tpu.memory_space<vmem>>, vector<128x128xf32>
    tpu.vector_store %arg13[%c0_29, %c0_30], %45 {strides = array<i32>} : memref<128x128xf32, #tpu.memory_space<vmem>>, vector<128x128xf32>,
    return
  }
  func.func @transform_0(%arg0: i32) -> (i32, i32) {
    %c0_i32 = arith.constant 0 : i32
    %c0_i32_0 = arith.constant 0 : i32
    return %arg0, %c0_i32 : i32, i32
  }
  func.func @transform_1(%arg0: i32) -> (i32, i32) {
    %c0_i32 = arith.constant 0 : i32
    %c0_i32_0 = arith.constant 0 : i32
    return %arg0, %c0_i32 : i32, i32
  }
  func.func @transform_2(%arg0: i32) -> (i32, i32) {
    %c0_i32 = arith.constant 0 : i32
    %c0_i32_0 = arith.constant 0 : i32
    return %arg0, %c0_i32 : i32, i32
  }
  func.func @transform_3(%arg0: i32) -> (i32, i32) {
    %c0_i32 = arith.constant 0 : i32
    %c0_i32_0 = arith.constant 0 : i32
    %c0_i32_1 = arith.constant 0 : i32
    return %c0_i32, %c0_i32_0 : i32, i32
  }
  func.func @transform_4(%arg0: i32) -> (i32, i32) {
    %c0_i32 = arith.constant 0 : i32
    %c0_i32_0 = arith.constant 0 : i32
    %c0_i32_1 = arith.constant 0 : i32
    return %c0_i32, %c0_i32_0 : i32, i32
  }
  func.func @transform_5(%arg0: i32) -> (i32, i32) {
    %c0_i32 = arith.constant 0 : i32
    %c0_i32_0 = arith.constant 0 : i32
    %c0_i32_1 = arith.constant 0 : i32
    return %c0_i32, %c0_i32_0 : i32, i32
  }
  func.func @transform_6(%arg0: i32) -> (i32, i32) {
    %c0_i32 = arith.constant 0 : i32
    %c0_i32_0 = arith.constant 0 : i32
    %c0_i32_1 = arith.constant 0 : i32
    return %c0_i32, %c0_i32_0 : i32, i32
  }
  func.func @transform_7(%arg0: i32) -> (i32, i32) {
    %c0_i32 = arith.constant 0 : i32
    %c0_i32_0 = arith.constant 0 : i32
    %c0_i32_1 = arith.constant 0 : i32
    return %c0_i32, %c0_i32_0 : i32, i32
  }
  func.func @transform_8(%arg0: i32) -> (i32, i32) {
    %c0_i32 = arith.constant 0 : i32
    %c0_i32_0 = arith.constant 0 : i32
    %c0_i32_1 = arith.constant 0 : i32
    return %c0_i32, %c0_i32_0 : i32, i32
  }
  func.func @transform_9(%arg0: i32) -> (i32, i32) {
    %c0_i32 = arith.constant 0 : i32
    %c0_i32_0 = arith.constant 0 : i32
    %c0_i32_1 = arith.constant 0 : i32
    return %c0_i32, %c0_i32_0 : i32, i32
  }
  func.func @transform_10(%arg0: i32) -> (i32, i32) {
    %c0_i32 = arith.constant 0 : i32
    %c0_i32_0 = arith.constant 0 : i32
    %c0_i32_1 = arith.constant 0 : i32
    return %c0_i32, %c0_i32_0 : i32, i32
  }
  func.func @transform_11(%arg0: i32) -> (i32, i32) {
    %c0_i32 = arith.constant 0 : i32
    %c0_i32_0 = arith.constant 0 : i32
    %c0_i32_1 = arith.constant 0 : i32
    return %c0_i32, %c0_i32_0 : i32, i32
  }
  func.func @transform_12(%arg0: i32) -> (i32, i32) {
    %c0_i32 = arith.constant 0 : i32
    %c0_i32_0 = arith.constant 0 : i32
    return %arg0, %c0_i32 : i32, i32
  }
}

</mosaic_0001>

<llo_original>
// kernel: tpu_custom_call.1
$region0: #{tpu_custom_call.1}
  #allocation0 [shape = 'u32[]', space=smem, size = 0x4, offset = 0x4, fixed_abs, tag = 'smem constant byte address 0x4 - core index']
  #allocation1 [shape = 'u32[72,128]{1,0:T(1,128)}', space=vmem, size = 0x9000, scoped, tag = 'internal scratch']
  %s0 = inlined_call_operand.vmem [shape: s32[256,1], index: 0, kind: input, shape index: {}]
  %s1 = inlined_call_operand.vmem [shape: s32[256,1], index: 1, kind: input, shape index: {}]
  %s2 = inlined_call_operand.vmem [shape: f32[256,64], index: 2, kind: input, shape index: {}]
  %s3 = inlined_call_operand.vmem [shape: f32[128,128], index: 3, kind: input, shape index: {}]
  %s4 = inlined_call_operand.vmem [shape: f32[64,128], index: 4, kind: input, shape index: {}]
  %s5 = inlined_call_operand.vmem [shape: f32[1,128], index: 5, kind: input, shape index: {}]
  %s6 = inlined_call_operand.vmem [shape: f32[128,128], index: 6, kind: input, shape index: {}]
  %s7 = inlined_call_operand.vmem [shape: f32[1,128], index: 7, kind: input, shape index: {}]
  %s8 = inlined_call_operand.vmem [shape: f32[128,128], index: 8, kind: input, shape index: {}]
  %s9 = inlined_call_operand.vmem [shape: f32[1,128], index: 9, kind: input, shape index: {}]
  %s10 = inlined_call_operand.vmem [shape: f32[1,128], index: 10, kind: input, shape index: {}]
  %s11 = inlined_call_operand.vmem [shape: f32[1,128], index: 11, kind: input, shape index: {}]
  %s12 = inlined_call_operand.hbm [shape: f32[256,128], index: 12, kind: output, shape index: {}]
  %s13 = sld [smem:[#allocation0]]
  $region81: #{tpu_custom_call.1} parent=0
    _
  %s15 = ssub.s32 1, %s13
  %s16 = scalar_select 0, %s15, %s13
  $region1: #{tpu_custom_call.1} parent=0
    #allocation2 [shape = 'u8[131072]{0}', space=vmem, size = 0x20000, scoped, tag = 'output window, operand 0']
    #allocation3 [shape = 's32[2]{0}', space=sflag, size = 0x8, scoped, tag = 'scoped memory for tpu_custom_call.1']
    %17 = vsyncpa [#allocation3], 0
    %s18 = scalar_lea.sflag [#allocation3], 1
    %19 = vsyncpa %s18, 0
    loop: start=0, step=1, limit=4
    $region2: #{tpu_custom_call.1} parent=1 // loop_pre_header
      _
    $region3: #{tpu_custom_call.1} parent=1 // loop_header
      %s21 = sphi 0, %s25
      %p22 = scmp.ge.s32.totalorder %s21, 4
      %s31 = sphi 0, %s33
      %s34 = sphi 0, %s31
      %s35 = sphi 0, %s34
      %s51 = sphi 0, %s35
      %s57 = sphi 0, %s59
      %s60 = sphi 0, %s57
      %s61 = sphi 0, %s60
      %s77 = sphi 0, %s61
      %s83 = sphi 0, %s85
      %s86 = sphi 0, %s83
      %s87 = sphi 0, %s86
      %s103 = sphi 0, %s87
      %s107 = sphi 0, %s107
      %s109 = sphi 0, %s107
      %s110 = sphi 0, %s109
      %s124 = sphi 0, %s110
      %s128 = sphi 0, %s128
      %s130 = sphi 0, %s128
      %s131 = sphi 0, %s130
      %s145 = sphi 0, %s131
      %s149 = sphi 0, %s149
      %s151 = sphi 0, %s149
      %s152 = sphi 0, %s151
      %s166 = sphi 0, %s152
      %s170 = sphi 0, %s170
      %s172 = sphi 0, %s170
      %s173 = sphi 0, %s172
      %s187 = sphi 0, %s173
      %s191 = sphi 0, %s191
      %s193 = sphi 0, %s191
      %s194 = sphi 0, %s193
      %s208 = sphi 0, %s194
      %s212 = sphi 0, %s212
      %s214 = sphi 0, %s212
      %s215 = sphi 0, %s214
      %s229 = sphi 0, %s215
      %s233 = sphi 0, %s233
      %s235 = sphi 0, %s233
      %s236 = sphi 0, %s235
      %s250 = sphi 0, %s236
      %s254 = sphi 0, %s254
      %s256 = sphi 0, %s254
      %s257 = sphi 0, %s256
      %s271 = sphi 0, %s257
      %s275 = sphi 0, %s275
      %s277 = sphi 0, %s275
      %s278 = sphi 0, %s277
      %s292 = sphi 0, %s278
      %s298 = sphi 0, %s300
      %s301 = sphi 0, %s298
      %s302 = sphi 0, %s301
      %s318 = sphi 0, %s302
    $region4: #{tpu_custom_call.1} parent=1 // loop_header_branch
      %24 = sbr.rel (%p22) target = $region8
    $region5: #{tpu_custom_call.1} parent=1 // loop_body
      %s26 = ssub.s32 %s21, 1
      %s27 = ssub.s32 %s21, 2
      %s28 = sadd.s32 %s21, 1
      %s29 = ssub.s32 %s21, %s28
      %p30 = scmp.eq.s32.totalorder %s29, 0
      %s32 = sadd.s32 %s31, 1
      %s33 = scalar_select %p30, %s31, %s32
      %p36 = pneg %p30
      %p37 = scmp.eq.s32.totalorder %s21, 1
      %p38 = por %p36, %p37
      %p39 = scmp.ne.s32.totalorder %s31, %s34
      %p40 = scmp.eq.s32.totalorder %s21, 0
      %p41 = por %p39, %p40
      %p42 = scmp.ne.s32.totalorder %s31, %s34
      %p43 = scmp.eq.s32.totalorder %s26, 1
      %p44 = por %p42, %p43
      %p45 = scmp.ne.s32.totalorder %s34, %s35
      %p46 = scmp.eq.s32.totalorder %s26, 0
      %p47 = por %p45, %p46
      %p48 = scmp.ne.s32.totalorder %s34, %s35
      %p49 = scmp.eq.s32.totalorder %s27, 1
      %p50 = por %p48, %p49
      %p52 = scmp.ne.s32.totalorder %s35, %s51
      %p53 = scmp.eq.s32.totalorder %s27, 0
      %p54 = por %p52, %p53
      %s55 = ssub.s32 %s21, %s28
      %p56 = scmp.eq.s32.totalorder %s55, 0
      %s58 = sadd.s32 %s57, 1
      %s59 = scalar_select %p56, %s57, %s58
      %p62 = pneg %p56
      %p63 = scmp.eq.s32.totalorder %s21, 1
      %p64 = por %p62, %p63
      %p65 = scmp.ne.s32.totalorder %s57, %s60
      %p66 = scmp.eq.s32.totalorder %s21, 0
      %p67 = por %p65, %p66
      %p68 = scmp.ne.s32.totalorder %s57, %s60
      %p69 = scmp.eq.s32.totalorder %s26, 1
      %p70 = por %p68, %p69
      %p71 = scmp.ne.s32.totalorder %s60, %s61
      %p72 = scmp.eq.s32.totalorder %s26, 0
      %p73 = por %p71, %p72
      %p74 = scmp.ne.s32.totalorder %s60, %s61
      %p75 = scmp.eq.s32.totalorder %s27, 1
      %p76 = por %p74, %p75
      %p78 = scmp.ne.s32.totalorder %s61, %s77
      %p79 = scmp.eq.s32.totalorder %s27, 0
      %p80 = por %p78, %p79
      %s81 = ssub.s32 %s21, %s28
      %p82 = scmp.eq.s32.totalorder %s81, 0
      %s84 = sadd.s32 %s83, 1
      %s85 = scalar_select %p82, %s83, %s84
      %p88 = pneg %p82
      %p89 = scmp.eq.s32.totalorder %s21, 1
      %p90 = por %p88, %p89
      %p91 = scmp.ne.s32.totalorder %s83, %s86
      %p92 = scmp.eq.s32.totalorder %s21, 0
      %p93 = por %p91, %p92
      %p94 = scmp.ne.s32.totalorder %s83, %s86
      %p95 = scmp.eq.s32.totalorder %s26, 1
      %p96 = por %p94, %p95
      %p97 = scmp.ne.s32.totalorder %s86, %s87
      %p98 = scmp.eq.s32.totalorder %s26, 0
      %p99 = por %p97, %p98
      %p100 = scmp.ne.s32.totalorder %s86, %s87
      %p101 = scmp.eq.s32.totalorder %s27, 1
      %p102 = por %p100, %p101
      %p104 = scmp.ne.s32.totalorder %s87, %s103
      %p105 = scmp.eq.s32.totalorder %s27, 0
      %p106 = por %p104, %p105
      %s108 = sadd.s32 %s107, 1
      %p111 = scmp.eq.s32.totalorder %s21, 1
      %p112 = scmp.ne.s32.totalorder %s107, %s109
      %p113 = scmp.eq.s32.totalorder %s21, 0
      %p114 = por %p112, %p113
      %p115 = scmp.ne.s32.totalorder %s107, %s109
      %p116 = scmp.eq.s32.totalorder %s26, 1
      %p117 = por %p115, %p116
      %p118 = scmp.ne.s32.totalorder %s109, %s110
      %p119 = scmp.eq.s32.totalorder %s26, 0
      %p120 = por %p118, %p119
      %p121 = scmp.ne.s32.totalorder %s109, %s110
      %p122 = scmp.eq.s32.totalorder %s27, 1
      %p123 = por %p121, %p122
      %p125 = scmp.ne.s32.totalorder %s110, %s124
      %p126 = scmp.eq.s32.totalorder %s27, 0
      %p127 = por %p125, %p126
      %s129 = sadd.s32 %s128, 1
      %p132 = scmp.eq.s32.totalorder %s21, 1
      %p133 = scmp.ne.s32.totalorder %s128, %s130
      %p134 = scmp.eq.s32.totalorder %s21, 0
      %p135 = por %p133, %p134
      %p136 = scmp.ne.s32.totalorder %s128, %s130
      %p137 = scmp.eq.s32.totalorder %s26, 1
      %p138 = por %p136, %p137
      %p139 = scmp.ne.s32.totalorder %s130, %s131
      %p140 = scmp.eq.s32.totalorder %s26, 0
      %p141 = por %p139, %p140
      %p142 = scmp.ne.s32.totalorder %s130, %s131
      %p143 = scmp.eq.s32.totalorder %s27, 1
      %p144 = por %p142, %p143
      %p146 = scmp.ne.s32.totalorder %s131, %s145
      %p147 = scmp.eq.s32.totalorder %s27, 0
      %p148 = por %p146, %p147
      %s150 = sadd.s32 %s149, 1
      %p153 = scmp.eq.s32.totalorder %s21, 1
      %p154 = scmp.ne.s32.totalorder %s149, %s151
      %p155 = scmp.eq.s32.totalorder %s21, 0
      %p156 = por %p154, %p155
      %p157 = scmp.ne.s32.totalorder %s149, %s151
      %p158 = scmp.eq.s32.totalorder %s26, 1
      %p159 = por %p157, %p158
      %p160 = scmp.ne.s32.totalorder %s151, %s152
      %p161 = scmp.eq.s32.totalorder %s26, 0
      %p162 = por %p160, %p161
      %p163 = scmp.ne.s32.totalorder %s151, %s152
      %p164 = scmp.eq.s32.totalorder %s27, 1
      %p165 = por %p163, %p164
      %p167 = scmp.ne.s32.totalorder %s152, %s166
      %p168 = scmp.eq.s32.totalorder %s27, 0
      %p169 = por %p167, %p168
      %s171 = sadd.s32 %s170, 1
      %p174 = scmp.eq.s32.totalorder %s21, 1
      %p175 = scmp.ne.s32.totalorder %s170, %s172
      %p176 = scmp.eq.s32.totalorder %s21, 0
      %p177 = por %p175, %p176
      %p178 = scmp.ne.s32.totalorder %s170, %s172
      %p179 = scmp.eq.s32.totalorder %s26, 1
      %p180 = por %p178, %p179
      %p181 = scmp.ne.s32.totalorder %s172, %s173
      %p182 = scmp.eq.s32.totalorder %s26, 0
      %p183 = por %p181, %p182
      %p184 = scmp.ne.s32.totalorder %s172, %s173
      %p185 = scmp.eq.s32.totalorder %s27, 1
      %p186 = por %p184, %p185
      %p188 = scmp.ne.s32.totalorder %s173, %s187
      %p189 = scmp.eq.s32.totalorder %s27, 0
      %p190 = por %p188, %p189
      %s192 = sadd.s32 %s191, 1
      %p195 = scmp.eq.s32.totalorder %s21, 1
      %p196 = scmp.ne.s32.totalorder %s191, %s193
      %p197 = scmp.eq.s32.totalorder %s21, 0
      %p198 = por %p196, %p197
      %p199 = scmp.ne.s32.totalorder %s191, %s193
      %p200 = scmp.eq.s32.totalorder %s26, 1
      %p201 = por %p199, %p200
      %p202 = scmp.ne.s32.totalorder %s193, %s194
      %p203 = scmp.eq.s32.totalorder %s26, 0
      %p204 = por %p202, %p203
      %p205 = scmp.ne.s32.totalorder %s193, %s194
      %p206 = scmp.eq.s32.totalorder %s27, 1
      %p207 = por %p205, %p206
      %p209 = scmp.ne.s32.totalorder %s194, %s208
      %p210 = scmp.eq.s32.totalorder %s27, 0
      %p211 = por %p209, %p210
      %s213 = sadd.s32 %s212, 1
      %p216 = scmp.eq.s32.totalorder %s21, 1
      %p217 = scmp.ne.s32.totalorder %s212, %s214
      %p218 = scmp.eq.s32.totalorder %s21, 0
      %p219 = por %p217, %p218
      %p220 = scmp.ne.s32.totalorder %s212, %s214
      %p221 = scmp.eq.s32.totalorder %s26, 1
      %p222 = por %p220, %p221
      %p223 = scmp.ne.s32.totalorder %s214, %s215
      %p224 = scmp.eq.s32.totalorder %s26, 0
      %p225 = por %p223, %p224
      %p226 = scmp.ne.s32.totalorder %s214, %s215
      %p227 = scmp.eq.s32.totalorder %s27, 1
      %p228 = por %p226, %p227
      %p230 = scmp.ne.s32.totalorder %s215, %s229
      %p231 = scmp.eq.s32.totalorder %s27, 0
      %p232 = por %p230, %p231
      %s234 = sadd.s32 %s233, 1
      %p237 = scmp.eq.s32.totalorder %s21, 1
      %p238 = scmp.ne.s32.totalorder %s233, %s235
      %p239 = scmp.eq.s32.totalorder %s21, 0
      %p240 = por %p238, %p239
      %p241 = scmp.ne.s32.totalorder %s233, %s235
      %p242 = scmp.eq.s32.totalorder %s26, 1
      %p243 = por %p241, %p242
      %p244 = scmp.ne.s32.totalorder %s235, %s236
      %p245 = scmp.eq.s32.totalorder %s26, 0
      %p246 = por %p244, %p245
      %p247 = scmp.ne.s32.totalorder %s235, %s236
      %p248 = scmp.eq.s32.totalorder %s27, 1
      %p249 = por %p247, %p248
      %p251 = scmp.ne.s32.totalorder %s236, %s250
      %p252 = scmp.eq.s32.totalorder %s27, 0
      %p253 = por %p251, %p252
      %s255 = sadd.s32 %s254, 1
      %p258 = scmp.eq.s32.totalorder %s21, 1
      %p259 = scmp.ne.s32.totalorder %s254, %s256
      %p260 = scmp.eq.s32.totalorder %s21, 0
      %p261 = por %p259, %p260
      %p262 = scmp.ne.s32.totalorder %s254, %s256
      %p263 = scmp.eq.s32.totalorder %s26, 1
      %p264 = por %p262, %p263
      %p265 = scmp.ne.s32.totalorder %s256, %s257
      %p266 = scmp.eq.s32.totalorder %s26, 0
      %p267 = por %p265, %p266
      %p268 = scmp.ne.s32.totalorder %s256, %s257
      %p269 = scmp.eq.s32.totalorder %s27, 1
      %p270 = por %p268, %p269
      %p272 = scmp.ne.s32.totalorder %s257, %s271
      %p273 = scmp.eq.s32.totalorder %s27, 0
      %p274 = por %p272, %p273
      %s276 = sadd.s32 %s275, 1
      %p279 = scmp.eq.s32.totalorder %s21, 1
      %p280 = scmp.ne.s32.totalorder %s275, %s277
      %p281 = scmp.eq.s32.totalorder %s21, 0
      %p282 = por %p280, %p281
      %p283 = scmp.ne.s32.totalorder %s275, %s277
      %p284 = scmp.eq.s32.totalorder %s26, 1
      %p285 = por %p283, %p284
      %p286 = scmp.ne.s32.totalorder %s277, %s278
      %p287 = scmp.eq.s32.totalorder %s26, 0
      %p288 = por %p286, %p287
      %p289 = scmp.ne.s32.totalorder %s277, %s278
      %p290 = scmp.eq.s32.totalorder %s27, 1
      %p291 = por %p289, %p290
      %p293 = scmp.ne.s32.totalorder %s278, %s292
      %p294 = scmp.eq.s32.totalorder %s27, 0
      %p295 = por %p293, %p294
      %s296 = ssub.s32 %s21, %s28
      %p297 = scmp.eq.s32.totalorder %s296, 0
      %s299 = sadd.s32 %s298, 1
      %s300 = scalar_select %p297, %s298, %s299
      %p303 = pneg %p297
      %p304 = scmp.eq.s32.totalorder %s21, 1
      %p305 = por %p303, %p304
      %p306 = scmp.ne.s32.totalorder %s298, %s301
      %p307 = scmp.eq.s32.totalorder %s21, 0
      %p308 = por %p306, %p307
      %p309 = scmp.ne.s32.totalorder %s298, %s301
      %p310 = scmp.eq.s32.totalorder %s26, 1
      %p311 = por %p309, %p310
      %p312 = scmp.ne.s32.totalorder %s301, %s302
      %p313 = scmp.eq.s32.totalorder %s26, 0
      %p314 = por %p312, %p313
      %p315 = scmp.ne.s32.totalorder %s301, %s302
      %p316 = scmp.eq.s32.totalorder %s27, 1
      %p317 = por %p315, %p316
      %p319 = scmp.ne.s32.totalorder %s302, %s318
      %p320 = scmp.eq.s32.totalorder %s27, 0
      %p321 = por %p319, %p320
      %p322 = scmp.le.s32.totalorder 1, %s21
      %p323 = scmp.lt.s32.totalorder %s21, 3
      %p324 = pnand %p322, %p323
      %p325 = pneg %p324
      // Predicated region
      $region9: #{tpu_custom_call.1} parent=5 // pred_check
        _
      $region10: #{tpu_custom_call.1} parent=5 // pred_check_branch
        %327 = sbr.rel (%p324) target = $region12
      $region11: #{tpu_custom_call.1} parent=5 // pred_region
        %s328 = ssub.s32 %s21, 1
        // Predicated region
        $region13: #{tpu_custom_call.1} parent=11 // pred_check
          %p329 = pneg %p120
        $region14: #{tpu_custom_call.1} parent=11 // pred_check_branch
          %331 = sbr.rel (%p329) target = $region16
        $region15: #{tpu_custom_call.1} parent=11 // pred_region
          _
        $region16: #{tpu_custom_call.1} parent=11 // pred_fallthru
          _
        // Predicated region
        $region17: #{tpu_custom_call.1} parent=11 // pred_check
          %p332 = pneg %p141
        $region18: #{tpu_custom_call.1} parent=11 // pred_check_branch
          %334 = sbr.rel (%p332) target = $region20
        $region19: #{tpu_custom_call.1} parent=11 // pred_region
          _
        $region20: #{tpu_custom_call.1} parent=11 // pred_fallthru
          _
        // Predicated region
        $region21: #{tpu_custom_call.1} parent=11 // pred_check
          %p335 = pneg %p162
        $region22: #{tpu_custom_call.1} parent=11 // pred_check_branch
          %337 = sbr.rel (%p335) target = $region24
        $region23: #{tpu_custom_call.1} parent=11 // pred_region
          _
        $region24: #{tpu_custom_call.1} parent=11 // pred_fallthru
          _
        // Predicated region
        $region25: #{tpu_custom_call.1} parent=11 // pred_check
          %p338 = pneg %p183
        $region26: #{tpu_custom_call.1} parent=11 // pred_check_branch
          %340 = sbr.rel (%p338) target = $region28
        $region27: #{tpu_custom_call.1} parent=11 // pred_region
          _
        $region28: #{tpu_custom_call.1} parent=11 // pred_fallthru
          _
        // Predicated region
        $region29: #{tpu_custom_call.1} parent=11 // pred_check
          %p341 = pneg %p204
        $region30: #{tpu_custom_call.1} parent=11 // pred_check_branch
          %343 = sbr.rel (%p341) target = $region32
        $region31: #{tpu_custom_call.1} parent=11 // pred_region
          _
        $region32: #{tpu_custom_call.1} parent=11 // pred_fallthru
          _
        // Predicated region
        $region33: #{tpu_custom_call.1} parent=11 // pred_check
          %p344 = pneg %p225
        $region34: #{tpu_custom_call.1} parent=11 // pred_check_branch
          %346 = sbr.rel (%p344) target = $region36
        $region35: #{tpu_custom_call.1} parent=11 // pred_region
          _
        $region36: #{tpu_custom_call.1} parent=11 // pred_fallthru
          _
        // Predicated region
        $region37: #{tpu_custom_call.1} parent=11 // pred_check
          %p347 = pneg %p246
        $region38: #{tpu_custom_call.1} parent=11 // pred_check_branch
          %349 = sbr.rel (%p347) target = $region40
        $region39: #{tpu_custom_call.1} parent=11 // pred_region
          _
        $region40: #{tpu_custom_call.1} parent=11 // pred_fallthru
          _
        // Predicated region
        $region41: #{tpu_custom_call.1} parent=11 // pred_check
          %p350 = pneg %p267
        $region42: #{tpu_custom_call.1} parent=11 // pred_check_branch
          %352 = sbr.rel (%p350) target = $region44
        $region43: #{tpu_custom_call.1} parent=11 // pred_region
          _
        $region44: #{tpu_custom_call.1} parent=11 // pred_fallthru
          _
        // Predicated region
        $region45: #{tpu_custom_call.1} parent=11 // pred_check
          %p353 = pneg %p288
        $region46: #{tpu_custom_call.1} parent=11 // pred_check_branch
          %355 = sbr.rel (%p353) target = $region48
        $region47: #{tpu_custom_call.1} parent=11 // pred_region
          _
        $region48: #{tpu_custom_call.1} parent=11 // pred_fallthru
          _
      $region12: #{tpu_custom_call.1} parent=5 // pred_fallthru
        _
      %p356 = scmp.lt.s32.totalorder %s21, 2
      // Predicated region
      $region49: #{tpu_custom_call.1} parent=5 // pred_check
        %p357 = pneg %p356
      $region50: #{tpu_custom_call.1} parent=5 // pred_check_branch
        %359 = sbr.rel (%p357) target = $region52
      $region51: #{tpu_custom_call.1} parent=5 // pred_region
        // Predicated region
        $region53: #{tpu_custom_call.1} parent=51 // pred_check
          %p360 = pneg %p41
        $region54: #{tpu_custom_call.1} parent=51 // pred_check_branch
          %362 = sbr.rel (%p360) target = $region56
        $region55: #{tpu_custom_call.1} parent=51 // pred_region
          %s363 = smul.u32 16, %s21
          %p364 = scmp.lt.s32.totalorder %s363, 31
          %s365 = scalar_select %p364, %s363, 31
          %s366 = smul.addr %s365, 8
          %s367 = scalar_lea.vmem %s0, %s366
          %s368 = smul.u32 16, %s21
        $region56: #{tpu_custom_call.1} parent=51 // pred_fallthru
          _
        // Predicated region
        $region57: #{tpu_custom_call.1} parent=51 // pred_check
          %p369 = pneg %p67
        $region58: #{tpu_custom_call.1} parent=51 // pred_check_branch
          %371 = sbr.rel (%p369) target = $region60
        $region59: #{tpu_custom_call.1} parent=51 // pred_region
          %s372 = smul.u32 16, %s21
          %p373 = scmp.lt.s32.totalorder %s372, 31
          %s374 = scalar_select %p373, %s372, 31
          %s375 = smul.addr %s374, 8
          %s376 = scalar_lea.vmem %s1, %s375
          %s377 = smul.u32 16, %s21
        $region60: #{tpu_custom_call.1} parent=51 // pred_fallthru
          _
        // Predicated region
        $region61: #{tpu_custom_call.1} parent=51 // pred_check
          %p378 = pneg %p93
        $region62: #{tpu_custom_call.1} parent=51 // pred_check_branch
          %380 = sbr.rel (%p378) target = $region64
        $region63: #{tpu_custom_call.1} parent=51 // pred_region
          %s381 = smul.u32 16, %s21
          %p382 = scmp.lt.s32.totalorder %s381, 31
          %s383 = scalar_select %p382, %s381, 31
          %s384 = smul.addr %s383, 8
          %s385 = scalar_lea.vmem %s2, %s384
          %s386 = smul.u32 16, %s21
        $region64: #{tpu_custom_call.1} parent=51 // pred_fallthru
          _
      $region52: #{tpu_custom_call.1} parent=5 // pred_fallthru
        _
      %p387 = scmp.le.s32.totalorder 1, %s21
      %p388 = scmp.lt.s32.totalorder %s21, 3
      %p389 = pnand %p387, %p388
      %p390 = pneg %p389
      // Predicated region
      $region65: #{tpu_custom_call.1} parent=5 // pred_check
        _
      $region66: #{tpu_custom_call.1} parent=5 // pred_check_branch
        %392 = sbr.rel (%p389) target = $region68
      $region67: #{tpu_custom_call.1} parent=5 // pred_region
        %s393 = ssub.s32 %s21, 1
        %s394 = smul.u32 16, %s26
        %p395 = scmp.lt.s32.totalorder %s394, 31
        %s396 = scalar_select %p395, %s394, 31
        %s397 = smul.addr %s396, 8
        %s398 = scalar_lea.vmem %s0, %s397
        %p399 = pneg %p47
        %p400 = pneg %p44
        %s401 = smul.u32 16, %s26
        %p402 = scmp.lt.s32.totalorder %s401, 31
        %s403 = scalar_select %p402, %s401, 31
        %s404 = smul.addr %s403, 8
        %s405 = scalar_lea.vmem %s1, %s404
        %p406 = pneg %p73
        %p407 = pneg %p70
        %s408 = smul.u32 16, %s26
        %p409 = scmp.lt.s32.totalorder %s408, 31
        %s410 = scalar_select %p409, %s408, 31
        %s411 = smul.addr %s410, 8
        %s412 = scalar_lea.vmem %s2, %s411
        %p413 = pneg %p99
        %p414 = pneg %p96
        %p415 = pneg %p120
        %p416 = pneg %p117
        %p417 = pneg %p141
        %p418 = pneg %p138
        %p419 = pneg %p162
        %p420 = pneg %p159
        %p421 = pneg %p183
        %p422 = pneg %p180
        %p423 = pneg %p204
        %p424 = pneg %p201
        %p425 = pneg %p225
        %p426 = pneg %p222
        %p427 = pneg %p246
        %p428 = pneg %p243
        %p429 = pneg %p267
        %p430 = pneg %p264
        %p431 = pneg %p288
        %p432 = pneg %p285
        %p433 = pneg %p314
        %p434 = pneg %p311
        %s435 = sand.u32 %s301, 1
        %s436 = scalar_lea.sflag [#allocation3], %s435
        %s437 = sand.u32 %s301, 1
        %s438 = smul.addr %s437, 128
        %s439 = scalar_lea.vmem [#allocation2], %s438
        %s440 = smul.u32 16, %s26
        %p441 = scmp.lt.s32.totalorder %s440, 31
        %s442 = scalar_select %p441, %s440, 31
        %s443 = smul.addr %s442, 8
        %s444 = scalar_lea.vmem %s0, %s443
        %s445 = smul.u32 16, %s26
        %s446 = smul.u32 16, %s26
        %p447 = scmp.lt.s32.totalorder %s446, 31
        %s448 = scalar_select %p447, %s446, 31
        %s449 = smul.addr %s448, 8
        %s450 = scalar_lea.vmem %s1, %s449
        %s451 = smul.u32 16, %s26
        %s452 = smul.u32 16, %s26
        %p453 = scmp.lt.s32.totalorder %s452, 31
        %s454 = scalar_select %p453, %s452, 31
        %s455 = smul.addr %s454, 8
        %s456 = scalar_lea.vmem %s2, %s455
        %s457 = smul.u32 16, %s26
        %s458 = smul.u32 16, %s26
        %v459 = vlaneseq
        %v460 = vand.u32 %v459, 127
        %v461 = vld [vmem:[%s444] sm:$0xff]
        %v462 = vld [vmem:[%s444 + $0x8] sm:$0xff]
        %v463 = vld [vmem:[%s444 + $0x10] sm:$0xff]
        %v464 = vld [vmem:[%s444 + $0x18] sm:$0xff]
        %v465 = vld [vmem:[%s444 + $0x20] sm:$0xff]
        %v466 = vld [vmem:[%s444 + $0x28] sm:$0xff]
        %v467 = vld [vmem:[%s444 + $0x30] sm:$0xff]
        %v468 = vld [vmem:[%s444 + $0x38] sm:$0xff]
        %v469 = vld [vmem:[%s444 + $0x40] sm:$0xff]
        %v470 = vld [vmem:[%s444 + $0x48] sm:$0xff]
        %v471 = vld [vmem:[%s444 + $0x50] sm:$0xff]
        %v472 = vld [vmem:[%s444 + $0x58] sm:$0xff]
        %v473 = vld [vmem:[%s444 + $0x60] sm:$0xff]
        %v474 = vld [vmem:[%s444 + $0x68] sm:$0xff]
        %v475 = vld [vmem:[%s444 + $0x70] sm:$0xff]
        %v476 = vld [vmem:[%s444 + $0x78] sm:$0xff]
        %477 = vset.pattern.permute.xlu0 0
        %478 = vperm.xlu0 %477, %v461
        %v479 = vpop.permute.xlu0 %478
        %480 = vset.pattern.permute.xlu0 0
        %481 = vperm.xlu0 %480, %v462
        %v482 = vpop.permute.xlu0 %481
        %483 = vset.pattern.permute.xlu0 0
        %484 = vperm.xlu0 %483, %v463
        %v485 = vpop.permute.xlu0 %484
        %486 = vset.pattern.permute.xlu0 0
        %487 = vperm.xlu0 %486, %v464
        %v488 = vpop.permute.xlu0 %487
        %489 = vset.pattern.permute.xlu0 0
        %490 = vperm.xlu0 %489, %v465
        %v491 = vpop.permute.xlu0 %490
        %492 = vset.pattern.permute.xlu0 0
        %493 = vperm.xlu0 %492, %v466
        %v494 = vpop.permute.xlu0 %493
        %495 = vset.pattern.permute.xlu0 0
        %496 = vperm.xlu0 %495, %v467
        %v497 = vpop.permute.xlu0 %496
        %498 = vset.pattern.permute.xlu0 0
        %499 = vperm.xlu0 %498, %v468
        %v500 = vpop.permute.xlu0 %499
        %501 = vset.pattern.permute.xlu0 0
        %502 = vperm.xlu0 %501, %v469
        %v503 = vpop.permute.xlu0 %502
        %504 = vset.pattern.permute.xlu0 0
        %505 = vperm.xlu0 %504, %v470
        %v506 = vpop.permute.xlu0 %505
        %507 = vset.pattern.permute.xlu0 0
        %508 = vperm.xlu0 %507, %v471
        %v509 = vpop.permute.xlu0 %508
        %510 = vset.pattern.permute.xlu0 0
        %511 = vperm.xlu0 %510, %v472
        %v512 = vpop.permute.xlu0 %511
        %513 = vset.pattern.permute.xlu0 0
        %514 = vperm.xlu0 %513, %v473
        %v515 = vpop.permute.xlu0 %514
        %516 = vset.pattern.permute.xlu0 0
        %517 = vperm.xlu0 %516, %v474
        %v518 = vpop.permute.xlu0 %517
        %519 = vset.pattern.permute.xlu0 0
        %520 = vperm.xlu0 %519, %v475
        %v521 = vpop.permute.xlu0 %520
        %522 = vset.pattern.permute.xlu0 0
        %523 = vperm.xlu0 %522, %v476
        %v524 = vpop.permute.xlu0 %523
        %vm525 = vcmp.eq.s32.totalorder %v460, %v479
        %vm526 = vcmp.eq.s32.totalorder %v460, %v482
        %vm527 = vcmp.eq.s32.totalorder %v460, %v485
        %vm528 = vcmp.eq.s32.totalorder %v460, %v488
        %vm529 = vcmp.eq.s32.totalorder %v460, %v491
        %vm530 = vcmp.eq.s32.totalorder %v460, %v494
        %vm531 = vcmp.eq.s32.totalorder %v460, %v497
        %vm532 = vcmp.eq.s32.totalorder %v460, %v500
        %vm533 = vcmp.eq.s32.totalorder %v460, %v503
        %vm534 = vcmp.eq.s32.totalorder %v460, %v506
        %vm535 = vcmp.eq.s32.totalorder %v460, %v509
        %vm536 = vcmp.eq.s32.totalorder %v460, %v512
        %vm537 = vcmp.eq.s32.totalorder %v460, %v515
        %vm538 = vcmp.eq.s32.totalorder %v460, %v518
        %vm539 = vcmp.eq.s32.totalorder %v460, %v521
        %vm540 = vcmp.eq.s32.totalorder %v460, %v524
        %v541 = vld [vmem:[%s450] sm:$0xff]
        %v542 = vld [vmem:[%s450 + $0x8] sm:$0xff]
        %v543 = vld [vmem:[%s450 + $0x10] sm:$0xff]
        %v544 = vld [vmem:[%s450 + $0x18] sm:$0xff]
        %v545 = vld [vmem:[%s450 + $0x20] sm:$0xff]
        %v546 = vld [vmem:[%s450 + $0x28] sm:$0xff]
        %v547 = vld [vmem:[%s450 + $0x30] sm:$0xff]
        %v548 = vld [vmem:[%s450 + $0x38] sm:$0xff]
        %v549 = vld [vmem:[%s450 + $0x40] sm:$0xff]
        %v550 = vld [vmem:[%s450 + $0x48] sm:$0xff]
        %v551 = vld [vmem:[%s450 + $0x50] sm:$0xff]
        %v552 = vld [vmem:[%s450 + $0x58] sm:$0xff]
        %v553 = vld [vmem:[%s450 + $0x60] sm:$0xff]
        %v554 = vld [vmem:[%s450 + $0x68] sm:$0xff]
        %v555 = vld [vmem:[%s450 + $0x70] sm:$0xff]
        %v556 = vld [vmem:[%s450 + $0x78] sm:$0xff]
        %v557 = vadd.s32 %v541, 64
        %v558 = vadd.s32 %v542, 64
        %v559 = vadd.s32 %v543, 64
        %v560 = vadd.s32 %v544, 64
        %v561 = vadd.s32 %v545, 64
        %v562 = vadd.s32 %v546, 64
        %v563 = vadd.s32 %v547, 64
        %v564 = vadd.s32 %v548, 64
        %v565 = vadd.s32 %v549, 64
        %v566 = vadd.s32 %v550, 64
        %v567 = vadd.s32 %v551, 64
        %v568 = vadd.s32 %v552, 64
        %v569 = vadd.s32 %v553, 64
        %v570 = vadd.s32 %v554, 64
        %v571 = vadd.s32 %v555, 64
        %v572 = vadd.s32 %v556, 64
        %573 = vset.pattern.permute.xlu0 0
        %574 = vperm.xlu0 %573, %v557
        %v575 = vpop.permute.xlu0 %574
        %576 = vset.pattern.permute.xlu0 0
        %577 = vperm.xlu0 %576, %v558
        %v578 = vpop.permute.xlu0 %577
        %579 = vset.pattern.permute.xlu0 0
        %580 = vperm.xlu0 %579, %v559
        %v581 = vpop.permute.xlu0 %580
        %582 = vset.pattern.permute.xlu0 0
        %583 = vperm.xlu0 %582, %v560
        %v584 = vpop.permute.xlu0 %583
        %585 = vset.pattern.permute.xlu0 0
        %586 = vperm.xlu0 %585, %v561
        %v587 = vpop.permute.xlu0 %586
        %588 = vset.pattern.permute.xlu0 0
        %589 = vperm.xlu0 %588, %v562
        %v590 = vpop.permute.xlu0 %589
        %591 = vset.pattern.permute.xlu0 0
        %592 = vperm.xlu0 %591, %v563
        %v593 = vpop.permute.xlu0 %592
        %594 = vset.pattern.permute.xlu0 0
        %595 = vperm.xlu0 %594, %v564
        %v596 = vpop.permute.xlu0 %595
        %597 = vset.pattern.permute.xlu0 0
        %598 = vperm.xlu0 %597, %v565
        %v599 = vpop.permute.xlu0 %598
        %600 = vset.pattern.permute.xlu0 0
        %601 = vperm.xlu0 %600, %v566
        %v602 = vpop.permute.xlu0 %601
        %603 = vset.pattern.permute.xlu0 0
        %604 = vperm.xlu0 %603, %v567
        %v605 = vpop.permute.xlu0 %604
        %606 = vset.pattern.permute.xlu0 0
        %607 = vperm.xlu0 %606, %v568
        %v608 = vpop.permute.xlu0 %607
        %609 = vset.pattern.permute.xlu0 0
        %610 = vperm.xlu0 %609, %v569
        %v611 = vpop.permute.xlu0 %610
        %612 = vset.pattern.permute.xlu0 0
        %613 = vperm.xlu0 %612, %v570
        %v614 = vpop.permute.xlu0 %613
        %615 = vset.pattern.permute.xlu0 0
        %616 = vperm.xlu0 %615, %v571
        %v617 = vpop.permute.xlu0 %616
        %618 = vset.pattern.permute.xlu0 0
        %619 = vperm.xlu0 %618, %v572
        %v620 = vpop.permute.xlu0 %619
        %vm621 = vcmp.eq.s32.totalorder %v460, %v575
        %vm622 = vcmp.eq.s32.totalorder %v460, %v578
        %vm623 = vcmp.eq.s32.totalorder %v460, %v581
        %vm624 = vcmp.eq.s32.totalorder %v460, %v584
        %vm625 = vcmp.eq.s32.totalorder %v460, %v587
        %vm626 = vcmp.eq.s32.totalorder %v460, %v590
        %vm627 = vcmp.eq.s32.totalorder %v460, %v593
        %vm628 = vcmp.eq.s32.totalorder %v460, %v596
        %vm629 = vcmp.eq.s32.totalorder %v460, %v599
        %vm630 = vcmp.eq.s32.totalorder %v460, %v602
        %vm631 = vcmp.eq.s32.totalorder %v460, %v605
        %vm632 = vcmp.eq.s32.totalorder %v460, %v608
        %vm633 = vcmp.eq.s32.totalorder %v460, %v611
        %vm634 = vcmp.eq.s32.totalorder %v460, %v614
        %vm635 = vcmp.eq.s32.totalorder %v460, %v617
        %vm636 = vcmp.eq.s32.totalorder %v460, %v620
        %vm637 = vmor %vm525, %vm621
        %vm638 = vmor %vm526, %vm622
        %vm639 = vmor %vm527, %vm623
        %vm640 = vmor %vm528, %vm624
        %vm641 = vmor %vm529, %vm625
        %vm642 = vmor %vm530, %vm626
        %vm643 = vmor %vm531, %vm627
        %vm644 = vmor %vm532, %vm628
        %vm645 = vmor %vm533, %vm629
        %vm646 = vmor %vm534, %vm630
        %vm647 = vmor %vm535, %vm631
        %vm648 = vmor %vm536, %vm632
        %vm649 = vmor %vm537, %vm633
        %vm650 = vmor %vm538, %vm634
        %vm651 = vmor %vm539, %vm635
        %vm652 = vmor %vm540, %vm636
        %v653 = vsel %vm637, 1, 0
        %v654 = vsel %vm638, 1, 0
        %v655 = vsel %vm639, 1, 0
        %v656 = vsel %vm640, 1, 0
        %v657 = vsel %vm641, 1, 0
        %v658 = vsel %vm642, 1, 0
        %v659 = vsel %vm643, 1, 0
        %v660 = vsel %vm644, 1, 0
        %v661 = vsel %vm645, 1, 0
        %v662 = vsel %vm646, 1, 0
        %v663 = vsel %vm647, 1, 0
        %v664 = vsel %vm648, 1, 0
        %v665 = vsel %vm649, 1, 0
        %v666 = vsel %vm650, 1, 0
        %v667 = vsel %vm651, 1, 0
        %v668 = vsel %vm652, 1, 0
        %v669 = vcvt.s32.f32 %v653
        %v670 = vcvt.s32.f32 %v654
        %v671 = vcvt.s32.f32 %v655
        %v672 = vcvt.s32.f32 %v656
        %v673 = vcvt.s32.f32 %v657
        %v674 = vcvt.s32.f32 %v658
        %v675 = vcvt.s32.f32 %v659
        %v676 = vcvt.s32.f32 %v660
        %v677 = vcvt.s32.f32 %v661
        %v678 = vcvt.s32.f32 %v662
        %v679 = vcvt.s32.f32 %v663
        %v680 = vcvt.s32.f32 %v664
        %v681 = vcvt.s32.f32 %v665
        %v682 = vcvt.s32.f32 %v666
        %v683 = vcvt.s32.f32 %v667
        %v684 = vcvt.s32.f32 %v668
        %v685 = vld [vmem:[%s3] sm:$0xff]
        %v686 = vld [vmem:[%s3 + $0x8] sm:$0xff]
        %v687 = vld [vmem:[%s3 + $0x10] sm:$0xff]
        %v688 = vld [vmem:[%s3 + $0x18] sm:$0xff]
        %v689 = vld [vmem:[%s3 + $0x20] sm:$0xff]
        %v690 = vld [vmem:[%s3 + $0x28] sm:$0xff]
        %v691 = vld [vmem:[%s3 + $0x30] sm:$0xff]
        %v692 = vld [vmem:[%s3 + $0x38] sm:$0xff]
        %v693 = vld [vmem:[%s3 + $0x40] sm:$0xff]
        %v694 = vld [vmem:[%s3 + $0x48] sm:$0xff]
        %v695 = vld [vmem:[%s3 + $0x50] sm:$0xff]
        %v696 = vld [vmem:[%s3 + $0x58] sm:$0xff]
        %v697 = vld [vmem:[%s3 + $0x60] sm:$0xff]
        %v698 = vld [vmem:[%s3 + $0x68] sm:$0xff]
        %v699 = vld [vmem:[%s3 + $0x70] sm:$0xff]
        %v700 = vld [vmem:[%s3 + $0x78] sm:$0xff]
        %v701 = vld [vmem:[%s456] sm:$0xff]
        %v702 = vld [vmem:[%s456 + $0x8] sm:$0xff]
        %v703 = vld [vmem:[%s456 + $0x10] sm:$0xff]
        %v704 = vld [vmem:[%s456 + $0x18] sm:$0xff]
        %v705 = vld [vmem:[%s456 + $0x20] sm:$0xff]
        %v706 = vld [vmem:[%s456 + $0x28] sm:$0xff]
        %v707 = vld [vmem:[%s456 + $0x30] sm:$0xff]
        %v708 = vld [vmem:[%s456 + $0x38] sm:$0xff]
        %v709 = vld [vmem:[%s456 + $0x40] sm:$0xff]
        %v710 = vld [vmem:[%s456 + $0x48] sm:$0xff]
        %v711 = vld [vmem:[%s456 + $0x50] sm:$0xff]
        %v712 = vld [vmem:[%s456 + $0x58] sm:$0xff]
        %v713 = vld [vmem:[%s456 + $0x60] sm:$0xff]
        %v714 = vld [vmem:[%s456 + $0x68] sm:$0xff]
        %v715 = vld [vmem:[%s456 + $0x70] sm:$0xff]
        %v716 = vld [vmem:[%s456 + $0x78] sm:$0xff]
        %v717 = vld [vmem:[%s4] sm:$0xff]
        %v718 = vld [vmem:[%s4 + $0x8] sm:$0xff]
        %v719 = vld [vmem:[%s4 + $0x10] sm:$0xff]
        %v720 = vld [vmem:[%s4 + $0x18] sm:$0xff]
        %v721 = vld [vmem:[%s4 + $0x20] sm:$0xff]
        %v722 = vld [vmem:[%s4 + $0x28] sm:$0xff]
        %v723 = vld [vmem:[%s4 + $0x30] sm:$0xff]
        %v724 = vld [vmem:[%s4 + $0x38] sm:$0xff]
        %vm725 = vcmask 523264
        %v727 = vsel %vm725, %v701, 0
        %v730 = vsel %vm725, %v702, 0
        %v733 = vsel %vm725, %v703, 0
        %v736 = vsel %vm725, %v704, 0
        %v739 = vsel %vm725, %v705, 0
        %v742 = vsel %vm725, %v706, 0
        %v745 = vsel %vm725, %v707, 0
        %v748 = vsel %vm725, %v708, 0
        %v751 = vsel %vm725, %v709, 0
        %v754 = vsel %vm725, %v710, 0
        %v757 = vsel %vm725, %v711, 0
        %v760 = vsel %vm725, %v712, 0
        %v763 = vsel %vm725, %v713, 0
        %v766 = vsel %vm725, %v714, 0
        %v769 = vsel %vm725, %v715, 0
        %v772 = vsel %vm725, %v716, 0
        %774 = vmatpush.msra.mxu0 0.0
        %775 = vmatpush.msra.mxu0 0.0
        %776 = vmatpush.msra.mxu0 0.0
        %777 = vmatpush.msra.mxu0 0.0
        %778 = vmatpush.msra.mxu0 0.0
        %779 = vmatpush.msra.mxu0 0.0
        %780 = vmatpush.msra.mxu0 0.0
        %781 = vmatpush.msra.mxu0 0.0
        %782 = vmatpush.msra.mxu0 %v724
        %783 = vmatpush.msra.mxu0 %v723
        %784 = vmatpush.msra.mxu0 %v722
        %785 = vmatpush.msra.mxu0 %v721
        %786 = vmatpush.msra.mxu0 %v720
        %787 = vmatpush.msra.mxu0 %v719
        %788 = vmatpush.msra.mxu0 %v718
        %789 = vmatpush.msra.mxu0 %v717
        %790 = vmatmul.f32.gmra.mxu0 %v727
        %v791 = vpop.f32.mrf.mxu0
        %v792 = vadd.f32 0.0, %v791
        %793 = vmatmul.f32.gmra.mxu0 %v730
        %v794 = vpop.f32.mrf.mxu0
        %v795 = vadd.f32 0.0, %v794
        %796 = vmatmul.f32.gmra.mxu0 %v733
        %v797 = vpop.f32.mrf.mxu0
        %v798 = vadd.f32 0.0, %v797
        %799 = vmatmul.f32.gmra.mxu0 %v736
        %v800 = vpop.f32.mrf.mxu0
        %v801 = vadd.f32 0.0, %v800
        %802 = vmatmul.f32.gmra.mxu0 %v739
        %v803 = vpop.f32.mrf.mxu0
        %v804 = vadd.f32 0.0, %v803
        %805 = vmatmul.f32.gmra.mxu0 %v742
        %v806 = vpop.f32.mrf.mxu0
        %v807 = vadd.f32 0.0, %v806
        %808 = vmatmul.f32.gmra.mxu0 %v745
        %v809 = vpop.f32.mrf.mxu0
        %v810 = vadd.f32 0.0, %v809
        %811 = vmatmul.f32.gmra.mxu0 %v748
        %v812 = vpop.f32.mrf.mxu0
        %v813 = vadd.f32 0.0, %v812
        %814 = vmatmul.f32.gmra.mxu0 %v751
        %v815 = vpop.f32.mrf.mxu0
        %v816 = vadd.f32 0.0, %v815
        %817 = vmatmul.f32.gmra.mxu0 %v754
        %v818 = vpop.f32.mrf.mxu0
        %v819 = vadd.f32 0.0, %v818
        %820 = vmatmul.f32.gmra.mxu0 %v757
        %v821 = vpop.f32.mrf.mxu0
        %v822 = vadd.f32 0.0, %v821
        %823 = vmatmul.f32.gmra.mxu0 %v760
        %v824 = vpop.f32.mrf.mxu0
        %v825 = vadd.f32 0.0, %v824
        %826 = vmatmul.f32.gmra.mxu0 %v763
        %v827 = vpop.f32.mrf.mxu0
        %v828 = vadd.f32 0.0, %v827
        %829 = vmatmul.f32.gmra.mxu0 %v766
        %v830 = vpop.f32.mrf.mxu0
        %v831 = vadd.f32 0.0, %v830
        %832 = vmatmul.f32.gmra.mxu0 %v769
        %v833 = vpop.f32.mrf.mxu0
        %v834 = vadd.f32 0.0, %v833
        %835 = vmatmul.f32.gmra.mxu0 %v772
        %v836 = vpop.f32.mrf.mxu0
        %v837 = vadd.f32 0.0, %v836
        %838 = vdwg.mxu0
        %839 = vmatpush.msra.mxu0 %v700
        %840 = vmatpush.msra.mxu0 %v699
        %841 = vmatpush.msra.mxu0 %v698
        %842 = vmatpush.msra.mxu0 %v697
        %843 = vmatpush.msra.mxu0 %v696
        %844 = vmatpush.msra.mxu0 %v695
        %845 = vmatpush.msra.mxu0 %v694
        %846 = vmatpush.msra.mxu0 %v693
        %847 = vmatpush.msra.mxu0 %v692
        %848 = vmatpush.msra.mxu0 %v691
        %849 = vmatpush.msra.mxu0 %v690
        %850 = vmatpush.msra.mxu0 %v689
        %851 = vmatpush.msra.mxu0 %v688
        %852 = vmatpush.msra.mxu0 %v687
        %853 = vmatpush.msra.mxu0 %v686
        %854 = vmatpush.msra.mxu0 %v685
        %855 = vmatmul.f32.gmra.mxu0 %v669
        %v856 = vpop.f32.mrf.mxu0
        %v857 = vadd.f32 %v792, %v856
        %858 = vmatmul.f32.gmra.mxu0 %v670
        %v859 = vpop.f32.mrf.mxu0
        %v860 = vadd.f32 %v795, %v859
        %861 = vmatmul.f32.gmra.mxu0 %v671
        %v862 = vpop.f32.mrf.mxu0
        %v863 = vadd.f32 %v798, %v862
        %864 = vmatmul.f32.gmra.mxu0 %v672
        %v865 = vpop.f32.mrf.mxu0
        %v866 = vadd.f32 %v801, %v865
        %867 = vmatmul.f32.gmra.mxu0 %v673
        %v868 = vpop.f32.mrf.mxu0
        %v869 = vadd.f32 %v804, %v868
        %870 = vmatmul.f32.gmra.mxu0 %v674
        %v871 = vpop.f32.mrf.mxu0
        %v872 = vadd.f32 %v807, %v871
        %873 = vmatmul.f32.gmra.mxu0 %v675
        %v874 = vpop.f32.mrf.mxu0
        %v875 = vadd.f32 %v810, %v874
        %876 = vmatmul.f32.gmra.mxu0 %v676
        %v877 = vpop.f32.mrf.mxu0
        %v878 = vadd.f32 %v813, %v877
        %879 = vmatmul.f32.gmra.mxu0 %v677
        %v880 = vpop.f32.mrf.mxu0
        %v881 = vadd.f32 %v816, %v880
        %882 = vmatmul.f32.gmra.mxu0 %v678
        %v883 = vpop.f32.mrf.mxu0
        %v884 = vadd.f32 %v819, %v883
        %885 = vmatmul.f32.gmra.mxu0 %v679
        %v886 = vpop.f32.mrf.mxu0
        %v887 = vadd.f32 %v822, %v886
        %888 = vmatmul.f32.gmra.mxu0 %v680
        %v889 = vpop.f32.mrf.mxu0
        %v890 = vadd.f32 %v825, %v889
        %891 = vmatmul.f32.gmra.mxu0 %v681
        %v892 = vpop.f32.mrf.mxu0
        %v893 = vadd.f32 %v828, %v892
        %894 = vmatmul.f32.gmra.mxu0 %v682
        %v895 = vpop.f32.mrf.mxu0
        %v896 = vadd.f32 %v831, %v895
        %897 = vmatmul.f32.gmra.mxu0 %v683
        %v898 = vpop.f32.mrf.mxu0
        %v899 = vadd.f32 %v834, %v898
        %900 = vmatmul.f32.gmra.mxu0 %v684
        %v901 = vpop.f32.mrf.mxu0
        %v902 = vadd.f32 %v837, %v901
        %903 = vdwg.mxu0
        %v904 = vld [vmem:[%s5] sm:$0x1]
        %v906 = vperm.slane %v904, 0
        %v908 = vadd.f32 %v857, %v906
        %v909 = vadd.f32 %v860, %v906
        %v910 = vadd.f32 %v863, %v906
        %v911 = vadd.f32 %v866, %v906
        %v912 = vadd.f32 %v869, %v906
        %v913 = vadd.f32 %v872, %v906
        %v914 = vadd.f32 %v875, %v906
        %v915 = vadd.f32 %v878, %v906
        %v916 = vadd.f32 %v881, %v906
        %v917 = vadd.f32 %v884, %v906
        %v918 = vadd.f32 %v887, %v906
        %v919 = vadd.f32 %v890, %v906
        %v920 = vadd.f32 %v893, %v906
        %v921 = vadd.f32 %v896, %v906
        %v922 = vadd.f32 %v899, %v906
        %v923 = vadd.f32 %v902, %v906
        %v924 = vmul.f32 %v908, 0.01
        %v925 = vmul.f32 %v909, 0.01
        %v926 = vmul.f32 %v910, 0.01
        %v927 = vmul.f32 %v911, 0.01
        %v928 = vmul.f32 %v912, 0.01
        %v929 = vmul.f32 %v913, 0.01
        %v930 = vmul.f32 %v914, 0.01
        %v931 = vmul.f32 %v915, 0.01
        %v932 = vmul.f32 %v916, 0.01
        %v933 = vmul.f32 %v917, 0.01
        %v934 = vmul.f32 %v918, 0.01
        %v935 = vmul.f32 %v919, 0.01
        %v936 = vmul.f32 %v920, 0.01
        %v937 = vmul.f32 %v921, 0.01
        %v938 = vmul.f32 %v922, 0.01
        %v939 = vmul.f32 %v923, 0.01
        %v940 = vmax.f32 %v908, %v924
        %v941 = vmax.f32 %v909, %v925
        %v942 = vmax.f32 %v910, %v926
        %v943 = vmax.f32 %v911, %v927
        %v944 = vmax.f32 %v912, %v928
        %v945 = vmax.f32 %v913, %v929
        %v946 = vmax.f32 %v914, %v930
        %v947 = vmax.f32 %v915, %v931
        %v948 = vmax.f32 %v916, %v932
        %v949 = vmax.f32 %v917, %v933
        %v950 = vmax.f32 %v918, %v934
        %v951 = vmax.f32 %v919, %v935
        %v952 = vmax.f32 %v920, %v936
        %v953 = vmax.f32 %v921, %v937
        %v954 = vmax.f32 %v922, %v938
        %v955 = vmax.f32 %v923, %v939
        %v956 = vld [vmem:[%s6] sm:$0xff]
        %v957 = vld [vmem:[%s6 + $0x8] sm:$0xff]
        %v958 = vld [vmem:[%s6 + $0x10] sm:$0xff]
        %v959 = vld [vmem:[%s6 + $0x18] sm:$0xff]
        %v960 = vld [vmem:[%s6 + $0x20] sm:$0xff]
        %v961 = vld [vmem:[%s6 + $0x28] sm:$0xff]
        %v962 = vld [vmem:[%s6 + $0x30] sm:$0xff]
        %v963 = vld [vmem:[%s6 + $0x38] sm:$0xff]
        %v964 = vld [vmem:[%s6 + $0x40] sm:$0xff]
        %v965 = vld [vmem:[%s6 + $0x48] sm:$0xff]
        %v966 = vld [vmem:[%s6 + $0x50] sm:$0xff]
        %v967 = vld [vmem:[%s6 + $0x58] sm:$0xff]
        %v968 = vld [vmem:[%s6 + $0x60] sm:$0xff]
        %v969 = vld [vmem:[%s6 + $0x68] sm:$0xff]
        %v970 = vld [vmem:[%s6 + $0x70] sm:$0xff]
        %v971 = vld [vmem:[%s6 + $0x78] sm:$0xff]
        %v972 = vld [vmem:[%s7] sm:$0x1]
        %v974 = vperm.slane %v972, 0
        %976 = vmatpush.msra.mxu0 %v971
        %977 = vmatpush.msra.mxu0 %v970
        %978 = vmatpush.msra.mxu0 %v969
        %979 = vmatpush.msra.mxu0 %v968
        %980 = vmatpush.msra.mxu0 %v967
        %981 = vmatpush.msra.mxu0 %v966
        %982 = vmatpush.msra.mxu0 %v965
        %983 = vmatpush.msra.mxu0 %v964
        %984 = vmatpush.msra.mxu0 %v963
        %985 = vmatpush.msra.mxu0 %v962
        %986 = vmatpush.msra.mxu0 %v961
        %987 = vmatpush.msra.mxu0 %v960
        %988 = vmatpush.msra.mxu0 %v959
        %989 = vmatpush.msra.mxu0 %v958
        %990 = vmatpush.msra.mxu0 %v957
        %991 = vmatpush.msra.mxu0 %v956
        %992 = vmatmul.f32.gmra.mxu0 %v940
        %v993 = vpop.f32.mrf.mxu0
        %v994 = vadd.f32 %v974, %v993
        %995 = vmatmul.f32.gmra.mxu0 %v941
        %v996 = vpop.f32.mrf.mxu0
        %v997 = vadd.f32 %v974, %v996
        %998 = vmatmul.f32.gmra.mxu0 %v942
        %v999 = vpop.f32.mrf.mxu0
        %v1000 = vadd.f32 %v974, %v999
        %1001 = vmatmul.f32.gmra.mxu0 %v943
        %v1002 = vpop.f32.mrf.mxu0
        %v1003 = vadd.f32 %v974, %v1002
        %1004 = vmatmul.f32.gmra.mxu0 %v944
        %v1005 = vpop.f32.mrf.mxu0
        %v1006 = vadd.f32 %v974, %v1005
        %1007 = vmatmul.f32.gmra.mxu0 %v945
        %v1008 = vpop.f32.mrf.mxu0
        %v1009 = vadd.f32 %v974, %v1008
        %1010 = vmatmul.f32.gmra.mxu0 %v946
        %v1011 = vpop.f32.mrf.mxu0
        %v1012 = vadd.f32 %v974, %v1011
        %1013 = vmatmul.f32.gmra.mxu0 %v947
        %v1014 = vpop.f32.mrf.mxu0
        %v1015 = vadd.f32 %v974, %v1014
        %1016 = vmatmul.f32.gmra.mxu0 %v948
        %v1017 = vpop.f32.mrf.mxu0
        %v1018 = vadd.f32 %v974, %v1017
        %1019 = vmatmul.f32.gmra.mxu0 %v949
        %v1020 = vpop.f32.mrf.mxu0
        %v1021 = vadd.f32 %v974, %v1020
        %1022 = vmatmul.f32.gmra.mxu0 %v950
        %v1023 = vpop.f32.mrf.mxu0
        %v1024 = vadd.f32 %v974, %v1023
        %1025 = vmatmul.f32.gmra.mxu0 %v951
        %v1026 = vpop.f32.mrf.mxu0
        %v1027 = vadd.f32 %v974, %v1026
        %1028 = vmatmul.f32.gmra.mxu0 %v952
        %v1029 = vpop.f32.mrf.mxu0
        %v1030 = vadd.f32 %v974, %v1029
        %1031 = vmatmul.f32.gmra.mxu0 %v953
        %v1032 = vpop.f32.mrf.mxu0
        %v1033 = vadd.f32 %v974, %v1032
        %1034 = vmatmul.f32.gmra.mxu0 %v954
        %v1035 = vpop.f32.mrf.mxu0
        %v1036 = vadd.f32 %v974, %v1035
        %1037 = vmatmul.f32.gmra.mxu0 %v955
        %v1038 = vpop.f32.mrf.mxu0
        %v1039 = vadd.f32 %v974, %v1038
        %1040 = vdwg.mxu0
        %v1041 = vmul.f32 %v994, 0.01
        %v1042 = vmul.f32 %v997, 0.01
        %v1043 = vmul.f32 %v1000, 0.01
        %v1044 = vmul.f32 %v1003, 0.01
        %v1045 = vmul.f32 %v1006, 0.01
        %v1046 = vmul.f32 %v1009, 0.01
        %v1047 = vmul.f32 %v1012, 0.01
        %v1048 = vmul.f32 %v1015, 0.01
        %v1049 = vmul.f32 %v1018, 0.01
        %v1050 = vmul.f32 %v1021, 0.01
        %v1051 = vmul.f32 %v1024, 0.01
        %v1052 = vmul.f32 %v1027, 0.01
        %v1053 = vmul.f32 %v1030, 0.01
        %v1054 = vmul.f32 %v1033, 0.01
        %v1055 = vmul.f32 %v1036, 0.01
        %v1056 = vmul.f32 %v1039, 0.01
        %v1057 = vmax.f32 %v994, %v1041
        %v1058 = vmax.f32 %v997, %v1042
        %v1059 = vmax.f32 %v1000, %v1043
        %v1060 = vmax.f32 %v1003, %v1044
        %v1061 = vmax.f32 %v1006, %v1045
        %v1062 = vmax.f32 %v1009, %v1046
        %v1063 = vmax.f32 %v1012, %v1047
        %v1064 = vmax.f32 %v1015, %v1048
        %v1065 = vmax.f32 %v1018, %v1049
        %v1066 = vmax.f32 %v1021, %v1050
        %v1067 = vmax.f32 %v1024, %v1051
        %v1068 = vmax.f32 %v1027, %v1052
        %v1069 = vmax.f32 %v1030, %v1053
        %v1070 = vmax.f32 %v1033, %v1054
        %v1071 = vmax.f32 %v1036, %v1055
        %v1072 = vmax.f32 %v1039, %v1056
        %v1073 = vld [vmem:[%s8] sm:$0xff]
        %v1074 = vld [vmem:[%s8 + $0x8] sm:$0xff]
        %v1075 = vld [vmem:[%s8 + $0x10] sm:$0xff]
        %v1076 = vld [vmem:[%s8 + $0x18] sm:$0xff]
        %v1077 = vld [vmem:[%s8 + $0x20] sm:$0xff]
        %v1078 = vld [vmem:[%s8 + $0x28] sm:$0xff]
        %v1079 = vld [vmem:[%s8 + $0x30] sm:$0xff]
        %v1080 = vld [vmem:[%s8 + $0x38] sm:$0xff]
        %v1081 = vld [vmem:[%s8 + $0x40] sm:$0xff]
        %v1082 = vld [vmem:[%s8 + $0x48] sm:$0xff]
        %v1083 = vld [vmem:[%s8 + $0x50] sm:$0xff]
        %v1084 = vld [vmem:[%s8 + $0x58] sm:$0xff]
        %v1085 = vld [vmem:[%s8 + $0x60] sm:$0xff]
        %v1086 = vld [vmem:[%s8 + $0x68] sm:$0xff]
        %v1087 = vld [vmem:[%s8 + $0x70] sm:$0xff]
        %v1088 = vld [vmem:[%s8 + $0x78] sm:$0xff]
        %v1089 = vld [vmem:[%s9] sm:$0x1]
        %v1091 = vperm.slane %v1089, 0
        %1093 = vmatpush.msra.mxu0 %v1088
        %1094 = vmatpush.msra.mxu0 %v1087
        %1095 = vmatpush.msra.mxu0 %v1086
        %1096 = vmatpush.msra.mxu0 %v1085
        %1097 = vmatpush.msra.mxu0 %v1084
        %1098 = vmatpush.msra.mxu0 %v1083
        %1099 = vmatpush.msra.mxu0 %v1082
        %1100 = vmatpush.msra.mxu0 %v1081
        %1101 = vmatpush.msra.mxu0 %v1080
        %1102 = vmatpush.msra.mxu0 %v1079
        %1103 = vmatpush.msra.mxu0 %v1078
        %1104 = vmatpush.msra.mxu0 %v1077
        %1105 = vmatpush.msra.mxu0 %v1076
        %1106 = vmatpush.msra.mxu0 %v1075
        %1107 = vmatpush.msra.mxu0 %v1074
        %1108 = vmatpush.msra.mxu0 %v1073
        %1109 = vmatmul.f32.gmra.mxu0 %v1057
        %v1110 = vpop.f32.mrf.mxu0
        %v1111 = vadd.f32 %v1091, %v1110
        %1112 = vmatmul.f32.gmra.mxu0 %v1058
        %v1113 = vpop.f32.mrf.mxu0
        %v1114 = vadd.f32 %v1091, %v1113
        %1115 = vmatmul.f32.gmra.mxu0 %v1059
        %v1116 = vpop.f32.mrf.mxu0
        %v1117 = vadd.f32 %v1091, %v1116
        %1118 = vmatmul.f32.gmra.mxu0 %v1060
        %v1119 = vpop.f32.mrf.mxu0
        %v1120 = vadd.f32 %v1091, %v1119
        %1121 = vmatmul.f32.gmra.mxu0 %v1061
        %v1122 = vpop.f32.mrf.mxu0
        %v1123 = vadd.f32 %v1091, %v1122
        %1124 = vmatmul.f32.gmra.mxu0 %v1062
        %v1125 = vpop.f32.mrf.mxu0
        %v1126 = vadd.f32 %v1091, %v1125
        %1127 = vmatmul.f32.gmra.mxu0 %v1063
        %v1128 = vpop.f32.mrf.mxu0
        %v1129 = vadd.f32 %v1091, %v1128
        %1130 = vmatmul.f32.gmra.mxu0 %v1064
        %v1131 = vpop.f32.mrf.mxu0
        %v1132 = vadd.f32 %v1091, %v1131
        %1133 = vmatmul.f32.gmra.mxu0 %v1065
        %v1134 = vpop.f32.mrf.mxu0
        %v1135 = vadd.f32 %v1091, %v1134
        %1136 = vmatmul.f32.gmra.mxu0 %v1066
        %v1137 = vpop.f32.mrf.mxu0
        %v1138 = vadd.f32 %v1091, %v1137
        %1139 = vmatmul.f32.gmra.mxu0 %v1067
        %v1140 = vpop.f32.mrf.mxu0
        %v1141 = vadd.f32 %v1091, %v1140
        %1142 = vmatmul.f32.gmra.mxu0 %v1068
        %v1143 = vpop.f32.mrf.mxu0
        %v1144 = vadd.f32 %v1091, %v1143
        %1145 = vmatmul.f32.gmra.mxu0 %v1069
        %v1146 = vpop.f32.mrf.mxu0
        %v1147 = vadd.f32 %v1091, %v1146
        %1148 = vmatmul.f32.gmra.mxu0 %v1070
        %v1149 = vpop.f32.mrf.mxu0
        %v1150 = vadd.f32 %v1091, %v1149
        %1151 = vmatmul.f32.gmra.mxu0 %v1071
        %v1152 = vpop.f32.mrf.mxu0
        %v1153 = vadd.f32 %v1091, %v1152
        %1154 = vmatmul.f32.gmra.mxu0 %v1072
        %v1155 = vpop.f32.mrf.mxu0
        %v1156 = vadd.f32 %v1091, %v1155
        %1157 = vdwg.mxu0
        %v1158 = vmul.f32 %v1111, 0.01
        %v1159 = vmul.f32 %v1114, 0.01
        %v1160 = vmul.f32 %v1117, 0.01
        %v1161 = vmul.f32 %v1120, 0.01
        %v1162 = vmul.f32 %v1123, 0.01
        %v1163 = vmul.f32 %v1126, 0.01
        %v1164 = vmul.f32 %v1129, 0.01
        %v1165 = vmul.f32 %v1132, 0.01
        %v1166 = vmul.f32 %v1135, 0.01
        %v1167 = vmul.f32 %v1138, 0.01
        %v1168 = vmul.f32 %v1141, 0.01
        %v1169 = vmul.f32 %v1144, 0.01
        %v1170 = vmul.f32 %v1147, 0.01
        %v1171 = vmul.f32 %v1150, 0.01
        %v1172 = vmul.f32 %v1153, 0.01
        %v1173 = vmul.f32 %v1156, 0.01
        %v1174 = vmax.f32 %v1111, %v1158
        %v1175 = vmax.f32 %v1114, %v1159
        %v1176 = vmax.f32 %v1117, %v1160
        %v1177 = vmax.f32 %v1120, %v1161
        %v1178 = vmax.f32 %v1123, %v1162
        %v1179 = vmax.f32 %v1126, %v1163
        %v1180 = vmax.f32 %v1129, %v1164
        %v1181 = vmax.f32 %v1132, %v1165
        %v1182 = vmax.f32 %v1135, %v1166
        %v1183 = vmax.f32 %v1138, %v1167
        %v1184 = vmax.f32 %v1141, %v1168
        %v1185 = vmax.f32 %v1144, %v1169
        %v1186 = vmax.f32 %v1147, %v1170
        %v1187 = vmax.f32 %v1150, %v1171
        %v1188 = vmax.f32 %v1153, %v1172
        %v1189 = vmax.f32 %v1156, %v1173
        %v1190 = vld [vmem:[%s10] sm:$0x1]
        %v1192 = vperm.slane %v1190, 0
        %v1194 = vmul.f32 %v1174, %v1192
        %v1195 = vmul.f32 %v1175, %v1192
        %v1196 = vmul.f32 %v1176, %v1192
        %v1197 = vmul.f32 %v1177, %v1192
        %v1198 = vmul.f32 %v1178, %v1192
        %v1199 = vmul.f32 %v1179, %v1192
        %v1200 = vmul.f32 %v1180, %v1192
        %v1201 = vmul.f32 %v1181, %v1192
        %v1202 = vmul.f32 %v1182, %v1192
        %v1203 = vmul.f32 %v1183, %v1192
        %v1204 = vmul.f32 %v1184, %v1192
        %v1205 = vmul.f32 %v1185, %v1192
        %v1206 = vmul.f32 %v1186, %v1192
        %v1207 = vmul.f32 %v1187, %v1192
        %v1208 = vmul.f32 %v1188, %v1192
        %v1209 = vmul.f32 %v1189, %v1192
        %v1210 = vld [vmem:[%s11] sm:$0x1]
        %v1212 = vperm.slane %v1210, 0
        %v1214 = vadd.f32 %v1194, %v1212
        %v1215 = vadd.f32 %v1195, %v1212
        %v1216 = vadd.f32 %v1196, %v1212
        %v1217 = vadd.f32 %v1197, %v1212
        %v1218 = vadd.f32 %v1198, %v1212
        %v1219 = vadd.f32 %v1199, %v1212
        %v1220 = vadd.f32 %v1200, %v1212
        %v1221 = vadd.f32 %v1201, %v1212
        %v1222 = vadd.f32 %v1202, %v1212
        %v1223 = vadd.f32 %v1203, %v1212
        %v1224 = vadd.f32 %v1204, %v1212
        %v1225 = vadd.f32 %v1205, %v1212
        %v1226 = vadd.f32 %v1206, %v1212
        %v1227 = vadd.f32 %v1207, %v1212
        %v1228 = vadd.f32 %v1208, %v1212
        %v1229 = vadd.f32 %v1209, %v1212
        %1230 = vst [vmem:[%s439] sm:$0xff] %v1214
        %1231 = vst [vmem:[%s439 + $0x8] sm:$0xff] %v1215
        %1232 = vst [vmem:[%s439 + $0x10] sm:$0xff] %v1216
        %1233 = vst [vmem:[%s439 + $0x18] sm:$0xff] %v1217
        %1234 = vst [vmem:[%s439 + $0x20] sm:$0xff] %v1218
        %1235 = vst [vmem:[%s439 + $0x28] sm:$0xff] %v1219
        %1236 = vst [vmem:[%s439 + $0x30] sm:$0xff] %v1220
        %1237 = vst [vmem:[%s439 + $0x38] sm:$0xff] %v1221
        %1238 = vst [vmem:[%s439 + $0x40] sm:$0xff] %v1222
        %1239 = vst [vmem:[%s439 + $0x48] sm:$0xff] %v1223
        %1240 = vst [vmem:[%s439 + $0x50] sm:$0xff] %v1224
        %1241 = vst [vmem:[%s439 + $0x58] sm:$0xff] %v1225
        %1242 = vst [vmem:[%s439 + $0x60] sm:$0xff] %v1226
        %1243 = vst [vmem:[%s439 + $0x68] sm:$0xff] %v1227
        %1244 = vst [vmem:[%s439 + $0x70] sm:$0xff] %v1228
        %1245 = vst [vmem:[%s439 + $0x78] sm:$0xff] %v1229
        %s1246 = sand.u32 %s301, 1
        %s1247 = scalar_lea.sflag [#allocation3], %s1246
        %s1248 = sand.u32 %s301, 1
        %s1249 = smul.addr %s1248, 128
        %s1250 = scalar_lea.vmem [#allocation2], %s1249
        // Predicated region
        $region69: #{tpu_custom_call.1} parent=67 // pred_check
          %p1251 = pneg %p311
        $region70: #{tpu_custom_call.1} parent=67 // pred_check_branch
          %1253 = sbr.rel (%p1251) target = $region72
        $region71: #{tpu_custom_call.1} parent=67 // pred_region
          %s1254 = smul.u32 16, %s26
          %1256 = vsyncadd %s1247, 0
          %s1257 = smul.addr %s1254, 8
          %s1258 = scalar_lea.hbm %s12, %s1257
          %s1259 = sshll.u32 %s1250, 4
          %s1260 = int_to_ptr.vmem [resolvable:$true] %s1259
          %s1261 = sshll.u32 %s1258, 4
          %s1262 = int_to_ptr.hbm [resolvable:$true] %s1261
          %1267 = dma.vmem_to_hbm [thread:$0]  %s1260, 2048, %s1262, %s1247, 128, 128, 8
        $region72: #{tpu_custom_call.1} parent=67 // pred_fallthru
          _
      $region68: #{tpu_custom_call.1} parent=5 // pred_fallthru
        _
      %p1268 = scmp.le.s32.totalorder 2, %s21
      // Predicated region
      $region73: #{tpu_custom_call.1} parent=5 // pred_check
        %p1269 = pneg %p1268
      $region74: #{tpu_custom_call.1} parent=5 // pred_check_branch
        %1271 = sbr.rel (%p1269) target = $region76
      $region75: #{tpu_custom_call.1} parent=5 // pred_region
        %s1272 = ssub.s32 %s21, 2
        // Predicated region
        $region77: #{tpu_custom_call.1} parent=75 // pred_check
          %p1273 = pneg %p317
        $region78: #{tpu_custom_call.1} parent=75 // pred_check_branch
          %1275 = sbr.rel (%p1273) target = $region80
        $region79: #{tpu_custom_call.1} parent=75 // pred_region
          %s1276 = sand.u32 %s302, 1
          %s1277 = scalar_lea.sflag [#allocation3], %s1276
          %s1278 = sand.u32 %s302, 1
          %s1279 = smul.addr %s1278, 128
          %s1280 = scalar_lea.vmem [#allocation2], %s1279
          %1282 = dma.done %s1277, 2048
        $region80: #{tpu_custom_call.1} parent=75 // pred_fallthru
          _
      $region76: #{tpu_custom_call.1} parent=5 // pred_fallthru
        _
    $region6: #{tpu_custom_call.1} parent=1 // loop_footer
      %s25 = sadd.s32 1, %s21
    $region7: #{tpu_custom_call.1} parent=1 // loop_footer_branch
      %20 = sbr.rel target = $region3
    $region8: #{tpu_custom_call.1} parent=1 // loop_exit
      _
    %1283 = vsyncpa [#allocation3], 1
    %s1284 = scalar_lea.sflag [#allocation3], 1
    %1285 = vsyncpa %s1284, 1

</llo_original>
